<compile_context>
chip_gen: v7x
topology: tpu7x:2x2x1
jax: 0.10.0
libtpu: 0.0.40
codegen_flags: <defaults>
</compile_context>

<pallas_src>
import functools

import jax
import jax.numpy as jnp
from jax import lax
from jax.experimental import pallas as pl
from jax.experimental.pallas import tpu as pltpu


def _vq_kernel(z_ref, e_ref, ed_ref, e2h_ref,
               zq_ref, idx_ref, sq_ref, es_ref, cnt_ref,
               *, n_e, hw, tile_n, masked):
    """One (batch, token-tile) grid step against the full resident codebook.

    z_ref   : (1, e_dim, tile_n) f32   tokens (channels x tokens, NCHW slab)
    e_ref   : (n_e, e_dim)       f32   codebook (exact gathers / EMA)
    ed_ref  : (n_e, e_dim)       f32|bf16  codebook for the distance matmul
    e2h_ref : (n_e, 1)           f32   0.5 * ||e||^2 (precomputed, resident)
    zq_ref  : (1, e_dim, tile_n) f32   quantized tokens (out, lane-dense)
    idx_ref : (1, 1, tile_n)     i32   nearest-code indices (out, lane-dense)
    sq_ref  : (1, 1, tile_n)     f32   per-batch lane-wide sum ||z - z_q||^2
    es_ref  : (1, e_dim, n_e)    f32   per-batch running z @ onehot^T
    cnt_ref : (1, 8, n_e)        f32   per-batch running counts (8 equal rows)
    """
    t = pl.program_id(1)

    # Zero this batch's accumulators at the start of its token loop.  Per-batch
    # accumulators keep the batch grid axis truly "parallel" (megacore on v7x).
    @pl.when(t == 0)
    def _():
        sq_ref[...] = jnp.zeros_like(sq_ref)
        es_ref[...] = jnp.zeros_like(es_ref)
        cnt_ref[...] = jnp.zeros_like(cnt_ref)

    z = z_ref[0]                    # (e_dim, tile_n) f32, tokens on lanes
    e = e_ref[...]                  # (n_e, e_dim)    f32
    e_d = ed_ref[...]               # (n_e, e_dim)    distance dtype
    e2h = e2h_ref[...]              # (n_e, 1)        0.5 * ||e||^2

    if masked:
        lane = lax.broadcasted_iota(jnp.int32, (1, tile_n), 1)
        valid = (t * tile_n + lane) < hw                       # (1, tile_n)
        z = jnp.where(valid, z, 0.0)    # keep padding garbage out of the MXU
        vmask8 = jnp.broadcast_to(valid, (8, tile_n)).astype(jnp.float32)
    else:
        valid = None
        vmask8 = jnp.ones((8, tile_n), jnp.float32)

    # cross[c, t] = <e_c, z_t>  (dominant MXU matmul; optionally bf16 inputs).
    cross = lax.dot_general(e_d, z.astype(e_d.dtype), (((1,), (0,)), ((), ())),
                            preferred_element_type=jnp.float32)  # (n_e, tile_n)
    # ||z||^2 is a per-token constant, so the argmin only needs
    # 0.5*||e||^2 - <e,z>  (factor 2 folded into the precomputed norms).
    dpart = e2h - cross

    min_dpart = jnp.min(dpart, axis=0, keepdims=True)            # (1, tile_n)
    # TODO(synk): for very large n_e*tile_n, hoist code_iota into a VMEM
    # scratch and/or add a codebook-chunk axis with an online running argmin.
    code_iota = lax.broadcasted_iota(jnp.int32, (n_e, tile_n), 0)
    # First minimal index on ties (matches torch.argmin behaviour).
    idx = jnp.min(jnp.where(dpart == min_dpart, code_iota, n_e),
                  axis=0, keepdims=True).astype(jnp.int32)       # (1, tile_n)
    onehot = (code_iota == idx).astype(jnp.float32)              # (n_e, tile_n)

    # Quantized tokens: z_q = E^T @ onehot  (exact f32 one-hot gather on MXU).
    zq = lax.dot_general(e, onehot, (((0,), (0,)), ((), ())),
                         preferred_element_type=jnp.float32)     # (e_dim, tile_n)
    zq_ref[0] = zq.astype(zq_ref.dtype)
    idx_ref[0] = idx

    # Loss numerator ||z - z_q||^2: exact for either distance dtype, and kept
    # as a lane-wide running sum (no per-tile cross-lane reduce / (1,1) store).
    diff = z - zq
    min_d = jnp.sum(diff * diff, axis=0, keepdims=True)          # (1, tile_n)
    if masked:
        min_d = jnp.where(valid, min_d, 0.0)
    sq_ref[0] += min_d

    # EMA statistics: two matmuls sharing the one-hot (no sublane concat of z).
    #   feature sums (lane-dense on codes):  z @ onehot^T      -> (e_dim, n_e)
    #   cluster counts (8 identical rows):   vmask8 @ onehot^T -> (8, n_e)
    es_ref[0] += lax.dot_general(z, onehot, (((1,), (1,)), ((), ())),
                                 preferred_element_type=jnp.float32)
    cnt_ref[0] += lax.dot_general(vmask8, onehot, (((1,), (1,)), ((), ())),
                                  preferred_element_type=jnp.float32)


def _pick_tile_n(hw, n_e, e_dim, tile_n, vmem_cap):
    """Lane-aligned token tile: prefer a divisor of hw (no mask work on any
    tile) and keep the (n_e, tile_n) intermediates within a VMEM budget."""
    budget = int(vmem_cap * 0.35)

    def fits(tn):
        # cross / dpart / iota / onehot / select temp + f32 z, zq, diff copies.
        return (5 * n_e * tn + 6 * e_dim * tn) * 4 <= budget

    if hw <= 128:
        return hw
    if hw <= 256 and fits(hw):
        return hw
    cap = max(128, (min(tile_n, hw) // 128) * 128)
    while cap > 128 and not fits(cap):
        cap -= 128
    cand = cap
    while cand >= 128:                 # prefer hw % tn == 0 -> masked=False
        if hw % cand == 0:
            return cand
        cand -= 128
    return cap


def _vq_pallas(z3, e, e_d, e2half, *, tile_n):
    """z3: (B, e_dim, H*W) f32, e: (n_e, e_dim) f32, e_d: distance-dtype copy,
    e2half: (n_e, 1) f32 = 0.5*||e||^2."""
    B, e_dim, hw = z3.shape
    n_e = e.shape[0]

    try:                                    # generation-aware VMEM sizing
        vmem_cap = int(pltpu.get_tpu_info().vmem_capacity_bytes)
    except Exception:
        vmem_cap = 64 * 1024 * 1024         # conservative: v7x per-TC VMEM

    tn = _pick_tile_n(hw, n_e, e_dim, tile_n, vmem_cap)
    n_t = pl.cdiv(hw, tn)
    masked = (hw % tn) != 0                 # only then pay the lane-mask work

    # Size the scoped VMEM limit to actual need (double-buffered tiles +
    # resident codebooks + accumulators + intermediates) with headroom, and
    # never claim the whole physical VMEM (v7x only has 64 MiB per TC).
    ed_bytes = jnp.dtype(e_d.dtype).itemsize
    resident = n_e * e_dim * (4 + ed_bytes) + n_e * 4
    tile_io = 2 * (2 * e_dim * tn * 4 + tn * 4)            # z in, zq + idx out
    accums = 2 * (tn * 4 + e_dim * n_e * 4 + 8 * n_e * 4)  # sq, es, cnt blocks
    inters = (5 * n_e * tn + 6 * e_dim * tn) * 4
    need = 2 * resident + tile_io + accums + inters
    vmem_limit = int(min(max(need * 1.5 + (4 << 20), 32 << 20),
                         vmem_cap * 0.85))

    kernel = functools.partial(_vq_kernel, n_e=n_e, hw=hw, tile_n=tn,
                               masked=masked)

    out_shapes = (
        jax.ShapeDtypeStruct((B, e_dim, hw), jnp.float32),   # z_q (NCHW slab)
        jax.ShapeDtypeStruct((B, 1, hw), jnp.int32),         # indices
        jax.ShapeDtypeStruct((B, 1, tn), jnp.float32),       # lane-wide sq sums
        jax.ShapeDtypeStruct((B, e_dim, n_e), jnp.float32),  # z @ onehot^T
        jax.ShapeDtypeStruct((B, 8, n_e), jnp.float32),      # counts (row 0)
    )

    return pl.pallas_call(
        kernel,
        out_shape=out_shapes,
        grid_spec=pltpu.PrefetchScalarGridSpec(
            num_scalar_prefetch=0,
            grid=(B, n_t),
            in_specs=[
                pl.BlockSpec((1, e_dim, tn), lambda b, t: (b, 0, t)),
                pl.BlockSpec((n_e, e_dim), lambda b, t: (0, 0)),
                pl.BlockSpec((n_e, e_dim), lambda b, t: (0, 0)),
                pl.BlockSpec((n_e, 1), lambda b, t: (0, 0)),
            ],
            out_specs=[
                pl.BlockSpec((1, e_dim, tn), lambda b, t: (b, 0, t)),
                pl.BlockSpec((1, 1, tn), lambda b, t: (b, 0, t)),
                pl.BlockSpec((1, 1, tn), lambda b, t: (b, 0, 0)),
                pl.BlockSpec((1, e_dim, n_e), lambda b, t: (b, 0, 0)),
                pl.BlockSpec((1, 8, n_e), lambda b, t: (b, 0, 0)),
            ],
        ),
        # Per-batch accumulators are revisited only along the token axis, so
        # the batch axis is "parallel" (uses both TensorCores on v7x).
        compiler_params=pltpu.CompilerParams(
            dimension_semantics=("parallel", "arbitrary"),
            vmem_limit_bytes=vmem_limit,
        ),
    )(z3, e, e_d, e2half)


def moving_average_vq_forward(z, embedding, embedding_avg, cluster_size,
                              *, decay=0.99, beta=1.0, eps=1e-5,
                              training=True, tile_n=1024,
                              distance_dtype=None):
    """Forward pass of MovingAverageVectorQuantizer.

    z: (B, e_dim, H, W) float32 (NCHW, like the PyTorch module).
    distance_dtype: None/f32 for exact distances, jnp.bfloat16 to run the
    dominant distance matmul on the native bf16 MXU path (v6e/v7x).
    Returns (z_q, loss, indices, new_embedding, new_embedding_avg,
             new_cluster_size).  Buffer updates only happen if training=True.
    """
    B, C, H, W = z.shape
    n_e, e_dim = embedding.shape
    assert C == e_dim
    hw = H * W

    # NCHW -> (B, e_dim, H*W): a pure reshape, no transpose / extra HBM pass.
    z3 = z.reshape(B, e_dim, hw).astype(jnp.float32)
    emb = embedding.astype(jnp.float32)
    emb_d = emb if distance_dtype is None else emb.astype(distance_dtype)
    e2half = 0.5 * jnp.sum(emb * emb, axis=1, keepdims=True)      # (n_e, 1)

    zq3, idx3, sq_part, es_part, cnt_part = _vq_pallas(
        z3, emb, emb_d, e2half, tile_n=tile_n)

    z_q = zq3.reshape(B, e_dim, H, W)          # already NCHW, reshape only
    indices = idx3.reshape(B, H, W)

    # Tiny cross-batch / cross-lane reductions of the per-batch accumulators.
    sq_sum = jnp.sum(sq_part)
    emb_sum = jnp.sum(es_part, axis=0).T                 # (n_e, e_dim)
    counts = jnp.sum(cnt_part[:, 0, :], axis=0)          # (n_e,)

    # loss = beta * mean((zq.detach() - z)^2) + mean((zq - z.detach())^2);
    # both terms equal mean(||z - z_q||^2) in the forward pass.
    mse = sq_sum / jnp.float32(B * hw * e_dim)
    loss = (beta + 1.0) * mse

    # TODO(synk): straight-through estimator (z + (z_q - z).detach()) only
    # changes gradients; wrap this forward in jax.custom_vjp for training use.
    new_embedding = embedding
    new_embedding_avg = embedding_avg
    new_cluster_size = cluster_size
    if training:
        new_cluster_size = decay * cluster_size + (1.0 - decay) * counts
        new_embedding_avg = decay * embedding_avg + (1.0 - decay) * emb_sum
        n = new_cluster_size.sum()
        cs = (new_cluster_size + eps) / (n + n_e * eps) * n
        new_embedding = new_embedding_avg / cs[:, None]

    return (z_q, loss, indices, new_embedding, new_embedding_avg,
            new_cluster_size)


def _reference_forward(z, embedding):
    """Plain-JAX reference of the hot path for a sanity check."""
    B, C, H, W = z.shape
    z_nhwc = jnp.transpose(z, (0, 2, 3, 1))
    zf = z_nhwc.reshape(-1, C)
    d = (jnp.sum(zf ** 2, axis=1, keepdims=True)
         + jnp.sum(embedding ** 2, axis=1)[None, :]
         - 2.0 * zf @ embedding.T)
    idx = jnp.argmin(d, axis=1)
    zq = embedding[idx].reshape(z_nhwc.shape)
    return jnp.transpose(zq, (0, 3, 1, 2)), idx.reshape(B, H, W), zf, idx


if __name__ == "__main__":
    # Small, deterministic setup consistent with the module.
    B, e_dim, H, W = 2, 8, 16, 16
    n_e = 64
    decay, beta, eps = 0.99, 1.0, 1e-5

    key = jax.random.PRNGKey(0)
    k_emb, k_z = jax.random.split(key)
    embedding = jax.random.normal(k_emb, (n_e, e_dim), dtype=jnp.float32)
    embedding_avg = embedding
    cluster_size = jnp.zeros((n_e,), dtype=jnp.float32)
    z = jax.random.normal(k_z, (B, e_dim, H, W), dtype=jnp.float32)

    # Exact (f32 distance) path: strict checks against a plain-JAX reference.
    outs = moving_average_vq_forward(
        z, embedding, embedding_avg, cluster_size,
        decay=decay, beta=beta, eps=eps, training=True)
    (z_q, loss, indices, new_emb, new_emb_avg,
     new_csize) = jax.block_until_ready(outs)

    zq_ref, idx_map_ref, zf_ref, idx_flat_ref = _reference_forward(z, embedding)
    assert jnp.allclose(z_q, zq_ref, atol=1e-4), "z_q mismatch"
    assert jnp.array_equal(indices, idx_map_ref.astype(indices.dtype)), \
        "index mismatch"

    loss_ref = (beta + 1.0) * jnp.mean((zq_ref - z) ** 2)
    assert jnp.allclose(loss, loss_ref, rtol=1e-3, atol=1e-5), "loss mismatch"

    onehot_ref = jax.nn.one_hot(idx_flat_ref, n_e, dtype=jnp.float32)
    counts_ref = onehot_ref.sum(0)
    emb_sum_ref = onehot_ref.T @ zf_ref
    csize_ref = decay * cluster_size + (1.0 - decay) * counts_ref
    eavg_ref = decay * embedding_avg + (1.0 - decay) * emb_sum_ref
    assert jnp.allclose(new_csize, csize_ref, atol=1e-4), "cluster_size mismatch"
    assert jnp.allclose(new_emb_avg, eavg_ref, rtol=1e-3, atol=1e-4), \
        "embedding_avg mismatch"

    # bf16 distance-matmul path (native MXU dtype on v6e/v7x).  Near-tie tokens
    # may legally pick a different (equally-near) code, so use lenient checks.
    outs_bf = moving_average_vq_forward(
        z, embedding, embedding_avg, cluster_size,
        decay=decay, beta=beta, eps=eps, training=True,
        distance_dtype=jnp.bfloat16)
    zq_bf, loss_bf, idx_bf, *_ = jax.block_until_ready(outs_bf)
    match = jnp.mean((idx_bf == indices).astype(jnp.float32))
    assert match >= 0.90, "bf16 distance path disagrees too often"
    assert jnp.allclose(loss_bf, loss, rtol=5e-2, atol=1e-4), "bf16 loss drift"

    print("KERNEL_OK")
</pallas_src>

<mosaic_0001>
module attributes {stable_mosaic.version = 11 : i64} {
  func.func @_vq_kernel(%arg0: i32, %arg1: i32, %arg2: memref<1x8x256xf32, #tpu.memory_space<vmem>>, %arg3: memref<64x8xf32, #tpu.memory_space<vmem>>, %arg4: memref<64x8xf32, #tpu.memory_space<vmem>>, %arg5: memref<64x1xf32, #tpu.memory_space<vmem>>, %arg6: memref<1x8x256xf32, #tpu.memory_space<vmem>>, %arg7: memref<1x1x256xi32, #tpu.memory_space<vmem>>, %arg8: memref<1x1x256xf32, #tpu.memory_space<vmem>>, %arg9: memref<1x8x64xf32, #tpu.memory_space<vmem>>, %arg10: memref<1x8x64xf32, #tpu.memory_space<vmem>>) attributes {dimension_semantics = [#tpu.dimension_semantics<parallel>, #tpu.dimension_semantics<arbitrary>], iteration_bounds = array<i64: 2, 1>, scalar_prefetch = 0 : i64, scratch_operands = 0 : i64, tpu.core_type = #tpu.core_type<tc>, window_params = [{transform_indices = @transform_0, window_bounds = array<i64: 1, 8, 256>}, {pipeline_mode = #tpu.pipeline_mode<synchronous>, transform_indices = @transform_1, window_bounds = array<i64: 64, 8>}, {pipeline_mode = #tpu.pipeline_mode<synchronous>, transform_indices = @transform_2, window_bounds = array<i64: 64, 8>}, {pipeline_mode = #tpu.pipeline_mode<synchronous>, transform_indices = @transform_3, window_bounds = array<i64: 64, 1>}, {transform_indices = @transform_4, window_bounds = array<i64: 1, 8, 256>}, {transform_indices = @transform_5, window_bounds = array<i64: 1, 1, 256>}, {transform_indices = @transform_6, window_bounds = array<i64: 1, 1, 256>}, {transform_indices = @transform_7, window_bounds = array<i64: 1, 8, 64>}, {transform_indices = @transform_8, window_bounds = array<i64: 1, 8, 64>}]} {
    %c0_i32 = arith.constant 0 : i32
    %0 = arith.cmpi eq, %arg1, %c0_i32 : i32
    %1 = arith.extui %0 : i1 to i32
    %c0_i32_0 = arith.constant 0 : i32
    %2 = arith.cmpi ne, %1, %c0_i32_0 : i32
    scf.if %2 {
      %cst_40 = arith.constant 0.000000e+00 : f32
      %56 = vector.broadcast %cst_40 : f32 to vector<1x1x256xf32>
      %c0_41 = arith.constant 0 : index
      %c0_42 = arith.constant 0 : index
      %c0_43 = arith.constant 0 : index
      %57 = vector.load %arg8[%c0_41, %c0_42, %c0_43] : memref<1x1x256xf32, #tpu.memory_space<vmem>>, vector<1x1x256xf32>
      tpu.vector_store %arg8[%c0_41, %c0_42, %c0_43], %56 {strides = array<i32>} : memref<1x1x256xf32, #tpu.memory_space<vmem>>, vector<1x1x256xf32>,
      %cst_44 = arith.constant 0.000000e+00 : f32
      %58 = vector.broadcast %cst_44 : f32 to vector<1x8x64xf32>
      %c0_45 = arith.constant 0 : index
      %c0_46 = arith.constant 0 : index
      %c0_47 = arith.constant 0 : index
      %59 = vector.load %arg9[%c0_45, %c0_46, %c0_47] : memref<1x8x64xf32, #tpu.memory_space<vmem>>, vector<1x8x64xf32>
      tpu.vector_store %arg9[%c0_45, %c0_46, %c0_47], %58 {strides = array<i32>} : memref<1x8x64xf32, #tpu.memory_space<vmem>>, vector<1x8x64xf32>,
      %cst_48 = arith.constant 0.000000e+00 : f32
      %60 = vector.broadcast %cst_48 : f32 to vector<1x8x64xf32>
      %c0_49 = arith.constant 0 : index
      %c0_50 = arith.constant 0 : index
      %c0_51 = arith.constant 0 : index
      %61 = vector.load %arg10[%c0_49, %c0_50, %c0_51] : memref<1x8x64xf32, #tpu.memory_space<vmem>>, vector<1x8x64xf32>
      tpu.vector_store %arg10[%c0_49, %c0_50, %c0_51], %60 {strides = array<i32>} : memref<1x8x64xf32, #tpu.memory_space<vmem>>, vector<1x8x64xf32>,
    } else {
    }
    %c0 = arith.constant 0 : index
    %c0_1 = arith.constant 0 : index
    %c0_2 = arith.constant 0 : index
    %3 = vector.load %arg2[%c0, %c0_1, %c0_2] : memref<1x8x256xf32, #tpu.memory_space<vmem>>, vector<1x8x256xf32>
    %4 = vector.shape_cast %3 : vector<1x8x256xf32> to vector<8x256xf32>
    %c0_3 = arith.constant 0 : index
    %c0_4 = arith.constant 0 : index
    %5 = vector.load %arg3[%c0_3, %c0_4] : memref<64x8xf32, #tpu.memory_space<vmem>>, vector<64x8xf32>
    %c0_5 = arith.constant 0 : index
    %c0_6 = arith.constant 0 : index
    %6 = vector.load %arg4[%c0_5, %c0_6] : memref<64x8xf32, #tpu.memory_space<vmem>>, vector<64x8xf32>
    %c0_7 = arith.constant 0 : index
    %c0_8 = arith.constant 0 : index
    %7 = vector.load %arg5[%c0_7, %c0_8] : memref<64x1xf32, #tpu.memory_space<vmem>>, vector<64x1xf32>
    %cst = arith.constant 1.000000e+00 : f32
    %8 = vector.broadcast %cst : f32 to vector<8x256xf32>
    %cst_9 = arith.constant dense<0.000000e+00> : vector<64x256xf32>
    %9 = tpu.matmul %6, %4, %cst_9 {dimension_numbers = #tpu.dot_dimension_numbers<[1], [0], [0], [1], [0, 0, 1, 1], [], []>} : vector<64x8xf32>, vector<8x256xf32>, vector<64x256xf32> -> vector<64x256xf32>
    %10 = vector.broadcast %7 : vector<64x1xf32> to vector<64x256xf32>
    %11 = arith.subf %10, %9 : vector<64x256xf32>
    %cst_10 = arith.constant dense<0x7F800000> : vector<256xf32>
    %12 = vector.multi_reduction <minimumf>, %11, %cst_10 [0] : vector<64x256xf32> to vector<256xf32>
    %13 = vector.shape_cast %12 : vector<256xf32> to vector<1x256xf32>
    %14 = tpu.iota {dimensions = array<i32: 0>} : vector<64x256xi32>
    %15 = vector.broadcast %13 : vector<1x256xf32> to vector<64x256xf32>
    %16 = arith.cmpf oeq, %11, %15 : vector<64x256xf32>
    %c64_i32 = arith.constant 64 : i32
    %17 = vector.broadcast %c64_i32 : i32 to vector<64x256xi32>
    %18 = arith.select %16, %14, %17 : vector<64x256xi1>, vector<64x256xi32>
    %cst_11 = arith.constant dense<2147483647> : vector<256xi32>
    %19 = vector.multi_reduction <minsi>, %18, %cst_11 [0] : vector<64x256xi32> to vector<256xi32>
    %20 = vector.shape_cast %19 : vector<256xi32> to vector<1x256xi32>
    %21 = vector.broadcast %20 : vector<1x256xi32> to vector<64x256xi32>
    %22 = arith.cmpi eq, %14, %21 : vector<64x256xi32>
    %23 = arith.extui %22 : vector<64x256xi1> to vector<64x256xi32>
    %24 = arith.sitofp %23 : vector<64x256xi32> to vector<64x256xf32>
    %cst_12 = arith.constant dense<0.000000e+00> : vector<8x256xf32>
    %25 = tpu.matmul %5, %24, %cst_12 {dimension_numbers = #tpu.dot_dimension_numbers<[0], [0], [1], [1], [0, 1, 1, 1], [], []>} : vector<64x8xf32>, vector<64x256xf32>, vector<8x256xf32> -> vector<8x256xf32>
    %c0_13 = arith.constant 0 : index
    %c0_14 = arith.constant 0 : index
    %c0_15 = arith.constant 0 : index
    %26 = vector.load %arg6[%c0_13, %c0_14, %c0_15] : memref<1x8x256xf32, #tpu.memory_space<vmem>>, vector<1x8x256xf32>
    %27 = vector.shape_cast %26 : vector<1x8x256xf32> to vector<8x256xf32>
    %28 = vector.shape_cast %25 : vector<8x256xf32> to vector<1x8x256xf32>
    tpu.vector_store %arg6[%c0_13, %c0_14, %c0_15], %28 {strides = array<i32>} : memref<1x8x256xf32, #tpu.memory_space<vmem>>, vector<1x8x256xf32>,
    %c0_16 = arith.constant 0 : index
    %c0_17 = arith.constant 0 : index
    %c0_18 = arith.constant 0 : index
    %29 = vector.load %arg7[%c0_16, %c0_17, %c0_18] : memref<1x1x256xi32, #tpu.memory_space<vmem>>, vector<1x1x256xi32>
    %30 = vector.shape_cast %29 : vector<1x1x256xi32> to vector<1x256xi32>
    %31 = vector.shape_cast %20 : vector<1x256xi32> to vector<1x1x256xi32>
    tpu.vector_store %arg7[%c0_16, %c0_17, %c0_18], %31 {strides = array<i32>} : memref<1x1x256xi32, #tpu.memory_space<vmem>>, vector<1x1x256xi32>,
    %32 = arith.subf %4, %25 : vector<8x256xf32>
    %33 = arith.mulf %32, %32 : vector<8x256xf32>
    %cst_19 = arith.constant dense<0.000000e+00> : vector<256xf32>
    %34 = vector.multi_reduction <add>, %33, %cst_19 [0] : vector<8x256xf32> to vector<256xf32>
    %35 = vector.shape_cast %34 : vector<256xf32> to vector<1x256xf32>
    %c0_20 = arith.constant 0 : index
    %c0_21 = arith.constant 0 : index
    %c0_22 = arith.constant 0 : index
    %36 = vector.load %arg8[%c0_20, %c0_21, %c0_22] : memref<1x1x256xf32, #tpu.memory_space<vmem>>, vector<1x1x256xf32>
    %37 = vector.shape_cast %36 : vector<1x1x256xf32> to vector<1x256xf32>
    %38 = arith.addf %37, %35 : vector<1x256xf32>
    %c0_23 = arith.constant 0 : index
    %c0_24 = arith.constant 0 : index
    %c0_25 = arith.constant 0 : index
    %39 = vector.load %arg8[%c0_23, %c0_24, %c0_25] : memref<1x1x256xf32, #tpu.memory_space<vmem>>, vector<1x1x256xf32>
    %40 = vector.shape_cast %39 : vector<1x1x256xf32> to vector<1x256xf32>
    %41 = vector.shape_cast %38 : vector<1x256xf32> to vector<1x1x256xf32>
    tpu.vector_store %arg8[%c0_23, %c0_24, %c0_25], %41 {strides = array<i32>} : memref<1x1x256xf32, #tpu.memory_space<vmem>>, vector<1x1x256xf32>,
    %c0_26 = arith.constant 0 : index
    %c0_27 = arith.constant 0 : index
    %c0_28 = arith.constant 0 : index
    %42 = vector.load %arg9[%c0_26, %c0_27, %c0_28] : memref<1x8x64xf32, #tpu.memory_space<vmem>>, vector<1x8x64xf32>
    %43 = vector.shape_cast %42 : vector<1x8x64xf32> to vector<8x64xf32>
    %cst_29 = arith.constant dense<0.000000e+00> : vector<8x64xf32>
    %44 = tpu.matmul %4, %24, %cst_29 {dimension_numbers = #tpu.dot_dimension_numbers<[1], [1], [0], [0], [0, 0, 1, 0], [], []>} : vector<8x256xf32>, vector<64x256xf32>, vector<8x64xf32> -> vector<8x64xf32>
    %45 = arith.addf %43, %44 : vector<8x64xf32>
    %c0_30 = arith.constant 0 : index
    %c0_31 = arith.constant 0 : index
    %c0_32 = arith.constant 0 : index
    %46 = vector.load %arg9[%c0_30, %c0_31, %c0_32] : memref<1x8x64xf32, #tpu.memory_space<vmem>>, vector<1x8x64xf32>
    %47 = vector.shape_cast %46 : vector<1x8x64xf32> to vector<8x64xf32>
    %48 = vector.shape_cast %45 : vector<8x64xf32> to vector<1x8x64xf32>
    tpu.vector_store %arg9[%c0_30, %c0_31, %c0_32], %48 {strides = array<i32>} : memref<1x8x64xf32, #tpu.memory_space<vmem>>, vector<1x8x64xf32>,
    %c0_33 = arith.constant 0 : index
    %c0_34 = arith.constant 0 : index
    %c0_35 = arith.constant 0 : index
    %49 = vector.load %arg10[%c0_33, %c0_34, %c0_35] : memref<1x8x64xf32, #tpu.memory_space<vmem>>, vector<1x8x64xf32>
    %50 = vector.shape_cast %49 : vector<1x8x64xf32> to vector<8x64xf32>
    %cst_36 = arith.constant dense<0.000000e+00> : vector<8x64xf32>
    %51 = tpu.matmul %8, %24, %cst_36 {dimension_numbers = #tpu.dot_dimension_numbers<[1], [1], [0], [0], [0, 0, 1, 0], [], []>} : vector<8x256xf32>, vector<64x256xf32>, vector<8x64xf32> -> vector<8x64xf32>
    %52 = arith.addf %50, %51 : vector<8x64xf32>
    %c0_37 = arith.constant 0 : index
    %c0_38 = arith.constant 0 : index
    %c0_39 = arith.constant 0 : index
    %53 = vector.load %arg10[%c0_37, %c0_38, %c0_39] : memref<1x8x64xf32, #tpu.memory_space<vmem>>, vector<1x8x64xf32>
    %54 = vector.shape_cast %53 : vector<1x8x64xf32> to vector<8x64xf32>
    %55 = vector.shape_cast %52 : vector<8x64xf32> to vector<1x8x64xf32>
    tpu.vector_store %arg10[%c0_37, %c0_38, %c0_39], %55 {strides = array<i32>} : memref<1x8x64xf32, #tpu.memory_space<vmem>>, vector<1x8x64xf32>,
    return
  }
  func.func @transform_0(%arg0: i32, %arg1: i32) -> (i32, i32, i32) {
    %c0_i32 = arith.constant 0 : i32
    %c0_i32_0 = arith.constant 0 : i32
    return %arg0, %c0_i32, %arg1 : i32, i32, i32
  }
  func.func @transform_1(%arg0: i32, %arg1: i32) -> (i32, i32) {
    %c0_i32 = arith.constant 0 : i32
    %c0_i32_0 = arith.constant 0 : i32
    %c0_i32_1 = arith.constant 0 : i32
    return %c0_i32, %c0_i32_0 : i32, i32
  }
  func.func @transform_2(%arg0: i32, %arg1: i32) -> (i32, i32) {
    %c0_i32 = arith.constant 0 : i32
    %c0_i32_0 = arith.constant 0 : i32
    %c0_i32_1 = arith.constant 0 : i32
    return %c0_i32, %c0_i32_0 : i32, i32
  }
  func.func @transform_3(%arg0: i32, %arg1: i32) -> (i32, i32) {
    %c0_i32 = arith.constant 0 : i32
    %c0_i32_0 = arith.constant 0 : i32
    %c0_i32_1 = arith.constant 0 : i32
    return %c0_i32, %c0_i32_0 : i32, i32
  }
  func.func @transform_4(%arg0: i32, %arg1: i32) -> (i32, i32, i32) {
    %c0_i32 = arith.constant 0 : i32
    %c0_i32_0 = arith.constant 0 : i32
    return %arg0, %c0_i32, %arg1 : i32, i32, i32
  }
  func.func @transform_5(%arg0: i32, %arg1: i32) -> (i32, i32, i32) {
    %c0_i32 = arith.constant 0 : i32
    %c0_i32_0 = arith.constant 0 : i32
    return %arg0, %c0_i32, %arg1 : i32, i32, i32
  }
  func.func @transform_6(%arg0: i32, %arg1: i32) -> (i32, i32, i32) {
    %c0_i32 = arith.constant 0 : i32
    %c0_i32_0 = arith.constant 0 : i32
    %c0_i32_1 = arith.constant 0 : i32
    return %arg0, %c0_i32, %c0_i32_0 : i32, i32, i32
  }
  func.func @transform_7(%arg0: i32, %arg1: i32) -> (i32, i32, i32) {
    %c0_i32 = arith.constant 0 : i32
    %c0_i32_0 = arith.constant 0 : i32
    %c0_i32_1 = arith.constant 0 : i32
    return %arg0, %c0_i32, %c0_i32_0 : i32, i32, i32
  }
  func.func @transform_8(%arg0: i32, %arg1: i32) -> (i32, i32, i32) {
    %c0_i32 = arith.constant 0 : i32
    %c0_i32_0 = arith.constant 0 : i32
    %c0_i32_1 = arith.constant 0 : i32
    return %arg0, %c0_i32, %c0_i32_0 : i32, i32, i32
  }
}

</mosaic_0001>

<llo_original>
// kernel: tpu_custom_call.1
$region0: #{tpu_custom_call.1}
  #allocation0 [shape = 'u32[]', space=smem, size = 0x4, offset = 0x4, fixed_abs, tag = 'smem constant byte address 0x4 - core index']
  #allocation1 [shape = 'u32[144,128]{1,0:T(1,128)}', space=vmem, size = 0x12000, scoped, tag = 'internal scratch']
  %s0 = inlined_call_operand.vmem [shape: f32[2,8,256], index: 0, kind: input, shape index: {}]
  %s1 = inlined_call_operand.vmem [shape: f32[64,8], index: 1, kind: input, shape index: {}]
  %s2 = inlined_call_operand.vmem [shape: f32[64,8], index: 2, kind: input, shape index: {}]
  %s3 = inlined_call_operand.vmem [shape: f32[64,1], index: 3, kind: input, shape index: {}]
  %s4 = inlined_call_operand.hbm [shape: f32[2,8,256], index: 4, kind: output, shape index: {0}]
  %s5 = inlined_call_operand.hbm [shape: s32[2,1,256], index: 5, kind: output, shape index: {1}]
  %s6 = inlined_call_operand.hbm [shape: f32[2,1,256], index: 6, kind: output, shape index: {2}]
  %s7 = inlined_call_operand.hbm [shape: f32[2,8,64], index: 7, kind: output, shape index: {3}]
  %s8 = inlined_call_operand.hbm [shape: f32[2,8,64], index: 8, kind: output, shape index: {4}]
  %9 = xla_tuple %s4, %s5, %s6, %s7, %s8
  %s10 = sld [smem:[#allocation0]]
  $region85: #{tpu_custom_call.1} parent=0
    _
  %s12 = ssub.s32 1, %s10
  %s13 = scalar_select 0, %s12, %s10
  $region1: #{tpu_custom_call.1} parent=0
    #allocation2 [shape = 'u8[16384]{0}', space=vmem, size = 0x4000, scoped, tag = 'output window, operand 0']
    #allocation3 [shape = 's32[2]{0}', space=sflag, size = 0x8, scoped, tag = 'scoped memory for tpu_custom_call.1']
    #allocation4 [shape = 'u8[2048]{0}', space=vmem, size = 0x800, scoped, tag = 'output window, operand 1']
    #allocation5 [shape = 's32[2]{0}', space=sflag, size = 0x8, scoped, tag = 'scoped memory for tpu_custom_call.1']
    #allocation6 [shape = 'u8[2048]{0}', space=vmem, size = 0x800, scoped, tag = 'output window, operand 2']
    #allocation7 [shape = 'u8[8192]{0}', space=vmem, size = 0x2000, scoped, tag = 'output window, operand 3']
    #allocation8 [shape = 's32[2]{0}', space=sflag, size = 0x8, scoped, tag = 'scoped memory for tpu_custom_call.1']
    #allocation9 [shape = 'u8[8192]{0}', space=vmem, size = 0x2000, scoped, tag = 'output window, operand 4']
    %14 = vsyncpa [#allocation3], 0
    %s15 = scalar_lea.sflag [#allocation3], 1
    %16 = vsyncpa %s15, 0
    %17 = vsyncpa [#allocation5], 0
    %s18 = scalar_lea.sflag [#allocation5], 1
    %19 = vsyncpa %s18, 0
    %20 = vsyncpa [#allocation8], 0
    %s21 = scalar_lea.sflag [#allocation8], 1
    %22 = vsyncpa %s21, 0
    loop: start=0, step=1, limit=4
    $region2: #{tpu_custom_call.1} parent=1 // loop_pre_header
      _
    $region3: #{tpu_custom_call.1} parent=1 // loop_header
      %s24 = sphi 0, %s28
      %p25 = scmp.ge.s32.totalorder %s24, 4
      %s31 = sphi 0, %s43
      %s32 = sphi 0, %s39
      %s33 = sphi 0, %s31
      %s34 = sphi 0, %s32
      %s35 = sphi 0, %s33
      %s36 = sphi 0, %s34
      %s48 = sphi 0, %s50
      %s51 = sphi 0, %s48
      %s52 = sphi 0, %s51
      %s68 = sphi 0, %s52
      %s72 = sphi 0, %s72
      %s74 = sphi 0, %s72
      %s75 = sphi 0, %s74
      %s89 = sphi 0, %s75
      %s93 = sphi 0, %s93
      %s95 = sphi 0, %s93
      %s96 = sphi 0, %s95
      %s110 = sphi 0, %s96
      %s114 = sphi 0, %s114
      %s116 = sphi 0, %s114
      %s117 = sphi 0, %s116
      %s131 = sphi 0, %s117
      %s139 = sphi 0, %s141
      %s142 = sphi 0, %s139
      %s143 = sphi 0, %s142
      %s159 = sphi 0, %s143
      %s167 = sphi 0, %s169
      %s170 = sphi 0, %s167
      %s171 = sphi 0, %s170
      %s187 = sphi 0, %s171
      %s193 = sphi 0, %s195
      %s196 = sphi 0, %s193
      %s197 = sphi 0, %s196
      %s213 = sphi 0, %s197
      %s219 = sphi 0, %s221
      %s222 = sphi 0, %s219
      %s223 = sphi 0, %s222
      %s239 = sphi 0, %s223
      %s245 = sphi 0, %s247
      %s248 = sphi 0, %s245
      %s249 = sphi 0, %s248
      %s265 = sphi 0, %s249
    $region4: #{tpu_custom_call.1} parent=1 // loop_header_branch
      %27 = sbr.rel (%p25) target = $region8
    $region5: #{tpu_custom_call.1} parent=1 // loop_body
      %s29 = ssub.s32 %s24, 1
      %s30 = ssub.s32 %s24, 2
      %s37 = sadd.s32 1, %s32
      %p38 = scmp.ge.s32.totalorder %s37, 1
      %s39 = scalar_select %p38, 0, %s37
      %s40 = sadd.s32 1, %s31
      %s41 = scalar_select %p38, %s40, %s31
      %p42 = scmp.ge.s32.totalorder %s41, 2
      %s43 = scalar_select %p42, 0, %s41
      %s44 = ssub.s32 %s31, %s43
      %s45 = ssub.s32 %s32, %s39
      %s46 = sor.u32 %s44, %s45
      %p47 = scmp.eq.s32.totalorder %s46, 0
      %s49 = sadd.s32 %s48, 1
      %s50 = scalar_select %p47, %s48, %s49
      %p53 = pneg %p47
      %p54 = scmp.eq.s32.totalorder %s24, 1
      %p55 = por %p53, %p54
      %p56 = scmp.ne.s32.totalorder %s48, %s51
      %p57 = scmp.eq.s32.totalorder %s24, 0
      %p58 = por %p56, %p57
      %p59 = scmp.ne.s32.totalorder %s48, %s51
      %p60 = scmp.eq.s32.totalorder %s29, 1
      %p61 = por %p59, %p60
      %p62 = scmp.ne.s32.totalorder %s51, %s52
      %p63 = scmp.eq.s32.totalorder %s29, 0
      %p64 = por %p62, %p63
      %p65 = scmp.ne.s32.totalorder %s51, %s52
      %p66 = scmp.eq.s32.totalorder %s30, 1
      %p67 = por %p65, %p66
      %p69 = scmp.ne.s32.totalorder %s52, %s68
      %p70 = scmp.eq.s32.totalorder %s30, 0
      %p71 = por %p69, %p70
      %s73 = sadd.s32 %s72, 1
      %p76 = scmp.eq.s32.totalorder %s24, 1
      %p77 = scmp.ne.s32.totalorder %s72, %s74
      %p78 = scmp.eq.s32.totalorder %s24, 0
      %p79 = por %p77, %p78
      %p80 = scmp.ne.s32.totalorder %s72, %s74
      %p81 = scmp.eq.s32.totalorder %s29, 1
      %p82 = por %p80, %p81
      %p83 = scmp.ne.s32.totalorder %s74, %s75
      %p84 = scmp.eq.s32.totalorder %s29, 0
      %p85 = por %p83, %p84
      %p86 = scmp.ne.s32.totalorder %s74, %s75
      %p87 = scmp.eq.s32.totalorder %s30, 1
      %p88 = por %p86, %p87
      %p90 = scmp.ne.s32.totalorder %s75, %s89
      %p91 = scmp.eq.s32.totalorder %s30, 0
      %p92 = por %p90, %p91
      %s94 = sadd.s32 %s93, 1
      %p97 = scmp.eq.s32.totalorder %s24, 1
      %p98 = scmp.ne.s32.totalorder %s93, %s95
      %p99 = scmp.eq.s32.totalorder %s24, 0
      %p100 = por %p98, %p99
      %p101 = scmp.ne.s32.totalorder %s93, %s95
      %p102 = scmp.eq.s32.totalorder %s29, 1
      %p103 = por %p101, %p102
      %p104 = scmp.ne.s32.totalorder %s95, %s96
      %p105 = scmp.eq.s32.totalorder %s29, 0
      %p106 = por %p104, %p105
      %p107 = scmp.ne.s32.totalorder %s95, %s96
      %p108 = scmp.eq.s32.totalorder %s30, 1
      %p109 = por %p107, %p108
      %p111 = scmp.ne.s32.totalorder %s96, %s110
      %p112 = scmp.eq.s32.totalorder %s30, 0
      %p113 = por %p111, %p112
      %s115 = sadd.s32 %s114, 1
      %p118 = scmp.eq.s32.totalorder %s24, 1
      %p119 = scmp.ne.s32.totalorder %s114, %s116
      %p120 = scmp.eq.s32.totalorder %s24, 0
      %p121 = por %p119, %p120
      %p122 = scmp.ne.s32.totalorder %s114, %s116
      %p123 = scmp.eq.s32.totalorder %s29, 1
      %p124 = por %p122, %p123
      %p125 = scmp.ne.s32.totalorder %s116, %s117
      %p126 = scmp.eq.s32.totalorder %s29, 0
      %p127 = por %p125, %p126
      %p128 = scmp.ne.s32.totalorder %s116, %s117
      %p129 = scmp.eq.s32.totalorder %s30, 1
      %p130 = por %p128, %p129
      %p132 = scmp.ne.s32.totalorder %s117, %s131
      %p133 = scmp.eq.s32.totalorder %s30, 0
      %p134 = por %p132, %p133
      %s135 = ssub.s32 %s31, %s43
      %s136 = ssub.s32 %s32, %s39
      %s137 = sor.u32 %s135, %s136
      %p138 = scmp.eq.s32.totalorder %s137, 0
      %s140 = sadd.s32 %s139, 1
      %s141 = scalar_select %p138, %s139, %s140
      %p144 = pneg %p138
      %p145 = scmp.eq.s32.totalorder %s24, 1
      %p146 = por %p144, %p145
      %p147 = scmp.ne.s32.totalorder %s139, %s142
      %p148 = scmp.eq.s32.totalorder %s24, 0
      %p149 = por %p147, %p148
      %p150 = scmp.ne.s32.totalorder %s139, %s142
      %p151 = scmp.eq.s32.totalorder %s29, 1
      %p152 = por %p150, %p151
      %p153 = scmp.ne.s32.totalorder %s142, %s143
      %p154 = scmp.eq.s32.totalorder %s29, 0
      %p155 = por %p153, %p154
      %p156 = scmp.ne.s32.totalorder %s142, %s143
      %p157 = scmp.eq.s32.totalorder %s30, 1
      %p158 = por %p156, %p157
      %p160 = scmp.ne.s32.totalorder %s143, %s159
      %p161 = scmp.eq.s32.totalorder %s30, 0
      %p162 = por %p160, %p161
      %s163 = ssub.s32 %s31, %s43
      %s164 = ssub.s32 %s32, %s39
      %s165 = sor.u32 %s163, %s164
      %p166 = scmp.eq.s32.totalorder %s165, 0
      %s168 = sadd.s32 %s167, 1
      %s169 = scalar_select %p166, %s167, %s168
      %p172 = pneg %p166
      %p173 = scmp.eq.s32.totalorder %s24, 1
      %p174 = por %p172, %p173
      %p175 = scmp.ne.s32.totalorder %s167, %s170
      %p176 = scmp.eq.s32.totalorder %s24, 0
      %p177 = por %p175, %p176
      %p178 = scmp.ne.s32.totalorder %s167, %s170
      %p179 = scmp.eq.s32.totalorder %s29, 1
      %p180 = por %p178, %p179
      %p181 = scmp.ne.s32.totalorder %s170, %s171
      %p182 = scmp.eq.s32.totalorder %s29, 0
      %p183 = por %p181, %p182
      %p184 = scmp.ne.s32.totalorder %s170, %s171
      %p185 = scmp.eq.s32.totalorder %s30, 1
      %p186 = por %p184, %p185
      %p188 = scmp.ne.s32.totalorder %s171, %s187
      %p189 = scmp.eq.s32.totalorder %s30, 0
      %p190 = por %p188, %p189
      %s191 = ssub.s32 %s31, %s43
      %p192 = scmp.eq.s32.totalorder %s191, 0
      %s194 = sadd.s32 %s193, 1
      %s195 = scalar_select %p192, %s193, %s194
      %p198 = pneg %p192
      %p199 = scmp.eq.s32.totalorder %s24, 1
      %p200 = por %p198, %p199
      %p201 = scmp.ne.s32.totalorder %s193, %s196
      %p202 = scmp.eq.s32.totalorder %s24, 0
      %p203 = por %p201, %p202
      %p204 = scmp.ne.s32.totalorder %s193, %s196
      %p205 = scmp.eq.s32.totalorder %s29, 1
      %p206 = por %p204, %p205
      %p207 = scmp.ne.s32.totalorder %s196, %s197
      %p208 = scmp.eq.s32.totalorder %s29, 0
      %p209 = por %p207, %p208
      %p210 = scmp.ne.s32.totalorder %s196, %s197
      %p211 = scmp.eq.s32.totalorder %s30, 1
      %p212 = por %p210, %p211
      %p214 = scmp.ne.s32.totalorder %s197, %s213
      %p215 = scmp.eq.s32.totalorder %s30, 0
      %p216 = por %p214, %p215
      %s217 = ssub.s32 %s31, %s43
      %p218 = scmp.eq.s32.totalorder %s217, 0
      %s220 = sadd.s32 %s219, 1
      %s221 = scalar_select %p218, %s219, %s220
      %p224 = pneg %p218
      %p225 = scmp.eq.s32.totalorder %s24, 1
      %p226 = por %p224, %p225
      %p227 = scmp.ne.s32.totalorder %s219, %s222
      %p228 = scmp.eq.s32.totalorder %s24, 0
      %p229 = por %p227, %p228
      %p230 = scmp.ne.s32.totalorder %s219, %s222
      %p231 = scmp.eq.s32.totalorder %s29, 1
      %p232 = por %p230, %p231
      %p233 = scmp.ne.s32.totalorder %s222, %s223
      %p234 = scmp.eq.s32.totalorder %s29, 0
      %p235 = por %p233, %p234
      %p236 = scmp.ne.s32.totalorder %s222, %s223
      %p237 = scmp.eq.s32.totalorder %s30, 1
      %p238 = por %p236, %p237
      %p240 = scmp.ne.s32.totalorder %s223, %s239
      %p241 = scmp.eq.s32.totalorder %s30, 0
      %p242 = por %p240, %p241
      %s243 = ssub.s32 %s31, %s43
      %p244 = scmp.eq.s32.totalorder %s243, 0
      %s246 = sadd.s32 %s245, 1
      %s247 = scalar_select %p244, %s245, %s246
      %p250 = pneg %p244
      %p251 = scmp.eq.s32.totalorder %s24, 1
      %p252 = por %p250, %p251
      %p253 = scmp.ne.s32.totalorder %s245, %s248
      %p254 = scmp.eq.s32.totalorder %s24, 0
      %p255 = por %p253, %p254
      %p256 = scmp.ne.s32.totalorder %s245, %s248
      %p257 = scmp.eq.s32.totalorder %s29, 1
      %p258 = por %p256, %p257
      %p259 = scmp.ne.s32.totalorder %s248, %s249
      %p260 = scmp.eq.s32.totalorder %s29, 0
      %p261 = por %p259, %p260
      %p262 = scmp.ne.s32.totalorder %s248, %s249
      %p263 = scmp.eq.s32.totalorder %s30, 1
      %p264 = por %p262, %p263
      %p266 = scmp.ne.s32.totalorder %s249, %s265
      %p267 = scmp.eq.s32.totalorder %s30, 0
      %p268 = por %p266, %p267
      %p269 = scmp.le.s32.totalorder 1, %s24
      %p270 = scmp.lt.s32.totalorder %s24, 3
      %p271 = pnand %p269, %p270
      %p272 = pneg %p271
      // Predicated region
      $region9: #{tpu_custom_call.1} parent=5 // pred_check
        _
      $region10: #{tpu_custom_call.1} parent=5 // pred_check_branch
        %274 = sbr.rel (%p271) target = $region12
      $region11: #{tpu_custom_call.1} parent=5 // pred_region
        %s275 = ssub.s32 %s24, 1
        // Predicated region
        $region13: #{tpu_custom_call.1} parent=11 // pred_check
          %p276 = pneg %p85
        $region14: #{tpu_custom_call.1} parent=11 // pred_check_branch
          %278 = sbr.rel (%p276) target = $region16
        $region15: #{tpu_custom_call.1} parent=11 // pred_region
          _
        $region16: #{tpu_custom_call.1} parent=11 // pred_fallthru
          _
        // Predicated region
        $region17: #{tpu_custom_call.1} parent=11 // pred_check
          %p279 = pneg %p106
        $region18: #{tpu_custom_call.1} parent=11 // pred_check_branch
          %281 = sbr.rel (%p279) target = $region20
        $region19: #{tpu_custom_call.1} parent=11 // pred_region
          _
        $region20: #{tpu_custom_call.1} parent=11 // pred_fallthru
          _
        // Predicated region
        $region21: #{tpu_custom_call.1} parent=11 // pred_check
          %p282 = pneg %p127
        $region22: #{tpu_custom_call.1} parent=11 // pred_check_branch
          %284 = sbr.rel (%p282) target = $region24
        $region23: #{tpu_custom_call.1} parent=11 // pred_region
          _
        $region24: #{tpu_custom_call.1} parent=11 // pred_fallthru
          _
      $region12: #{tpu_custom_call.1} parent=5 // pred_fallthru
        _
      %p285 = scmp.lt.s32.totalorder %s24, 2
      // Predicated region
      $region25: #{tpu_custom_call.1} parent=5 // pred_check
        %p286 = pneg %p285
      $region26: #{tpu_custom_call.1} parent=5 // pred_check_branch
        %288 = sbr.rel (%p286) target = $region28
      $region27: #{tpu_custom_call.1} parent=5 // pred_region
        // Predicated region
        $region29: #{tpu_custom_call.1} parent=27 // pred_check
          %p289 = pneg %p58
        $region30: #{tpu_custom_call.1} parent=27 // pred_check_branch
          %291 = sbr.rel (%p289) target = $region32
        $region31: #{tpu_custom_call.1} parent=27 // pred_region
          %s292 = smul.u32 2, %s32
          %p293 = scmp.lt.s32.totalorder %s31, 1
          %s294 = scalar_select %p293, %s31, 1
          %p295 = scmp.lt.s32.totalorder %s292, 1
          %s296 = scalar_select %p295, %s292, 1
          %s297 = smul.addr %s294, 2
          %s298 = sadd.s32 %s296, %s297
          %s299 = smul.addr %s298, 8
          %s300 = scalar_lea.vmem %s0, %s299
          %s301 = smul.u32 2, %s32
        $region32: #{tpu_custom_call.1} parent=27 // pred_fallthru
          _
      $region28: #{tpu_custom_call.1} parent=5 // pred_fallthru
        _
      %p302 = scmp.le.s32.totalorder 1, %s24
      %p303 = scmp.lt.s32.totalorder %s24, 3
      %p304 = pnand %p302, %p303
      %p305 = pneg %p304
      // Predicated region
      $region33: #{tpu_custom_call.1} parent=5 // pred_check
        _
      $region34: #{tpu_custom_call.1} parent=5 // pred_check_branch
        %307 = sbr.rel (%p304) target = $region36
      $region35: #{tpu_custom_call.1} parent=5 // pred_region
        %s308 = ssub.s32 %s24, 1
        %s309 = smul.u32 2, %s34
        %p310 = scmp.lt.s32.totalorder %s33, 1
        %s311 = scalar_select %p310, %s33, 1
        %p312 = scmp.lt.s32.totalorder %s309, 1
        %s313 = scalar_select %p312, %s309, 1
        %s314 = smul.addr %s311, 2
        %s315 = sadd.s32 %s313, %s314
        %s316 = smul.addr %s315, 8
        %s317 = scalar_lea.vmem %s0, %s316
        %p318 = pneg %p64
        %p319 = pneg %p61
        %p320 = pneg %p85
        %p321 = pneg %p82
        %p322 = pneg %p106
        %p323 = pneg %p103
        %p324 = pneg %p127
        %p325 = pneg %p124
        %p326 = pneg %p155
        %p327 = pneg %p152
        %s328 = sand.u32 %s142, 1
        %s329 = scalar_lea.sflag [#allocation3], %s328
        %s330 = sand.u32 %s142, 1
        %s331 = smul.addr %s330, 16
        %s332 = scalar_lea.vmem [#allocation2], %s331
        %p333 = pneg %p183
        %p334 = pneg %p180
        %s335 = sand.u32 %s29, 1
        %s336 = scalar_lea.sflag [#allocation5], %s335
        %s337 = sand.u32 %s170, 1
        %s338 = smul.addr %s337, 2
        %s339 = scalar_lea.vmem [#allocation4], %s338
        %p340 = pneg %p209
        %p341 = pneg %p206
        %s342 = sand.u32 %s29, 1
        %s343 = scalar_lea.sflag [#allocation5], %s342
        %s344 = sand.u32 %s196, 1
        %s345 = smul.addr %s344, 2
        %s346 = scalar_lea.vmem [#allocation6], %s345
        %p347 = pneg %p235
        %p348 = pneg %p232
        %s349 = sand.u32 %s29, 1
        %s350 = scalar_lea.sflag [#allocation8], %s349
        %s351 = sand.u32 %s222, 1
        %s352 = smul.addr %s351, 8
        %s353 = scalar_lea.vmem [#allocation7], %s352
        %p354 = pneg %p261
        %p355 = pneg %p258
        %s356 = sand.u32 %s29, 1
        %s357 = scalar_lea.sflag [#allocation8], %s356
        %s358 = sand.u32 %s248, 1
        %s359 = smul.addr %s358, 8
        %s360 = scalar_lea.vmem [#allocation9], %s359
        %s361 = smul.u32 2, %s34
        %p362 = scmp.lt.s32.totalorder %s33, 1
        %s363 = scalar_select %p362, %s33, 1
        %p364 = scmp.lt.s32.totalorder %s361, 1
        %s365 = scalar_select %p364, %s361, 1
        %s366 = smul.addr %s363, 2
        %s367 = sadd.s32 %s365, %s366
        %s368 = smul.addr %s367, 8
        %s369 = scalar_lea.vmem %s0, %s368
        %s370 = smul.u32 2, %s34
        %s371 = smul.u32 2, %s34
        %s372 = smul.u32 2, %s34
        %p373 = scmp.eq.s32.totalorder %s34, 0
        // Predicated region
        $region37: #{tpu_custom_call.1} parent=35 // pred_check
          %p374 = pneg %p373
        $region38: #{tpu_custom_call.1} parent=35 // pred_check_branch
          %376 = sbr.rel (%p374) target = $region40
        $region39: #{tpu_custom_call.1} parent=35 // pred_region
          %v377 = vlaneseq
          %vm378 = vcmp.ge.s32.totalorder %v377, 0
          %vm379 = vcmp.lt.s32.totalorder %v377, 256
          %vm380 = vmand %vm378, %vm379
          %381 = vst.msk [vmem:[%s346] sm:$0x3] %vm380, 0.0
          %vm382 = vcmask 523264
          %383 = vst.msk [vmem:[%s353] sm:$0xff] %vm382, 0.0
          %384 = vst.msk [vmem:[%s360] sm:$0xff] %vm382, 0.0
        $region40: #{tpu_custom_call.1} parent=35 // pred_fallthru
          _
        %v385 = vld [vmem:[%s369] sm:$0xff]
        %v386 = vld [vmem:[%s369 + $0x8] sm:$0xff]
        %v387 = vld [vmem:[%s1] sm:$0xff]
        %v388 = vld [vmem:[%s1 + $0x8] sm:$0xff]
        %v389 = vld [vmem:[%s1 + $0x10] sm:$0xff]
        %v390 = vld [vmem:[%s1 + $0x18] sm:$0xff]
        %v391 = vld [vmem:[%s1 + $0x20] sm:$0xff]
        %v392 = vld [vmem:[%s1 + $0x28] sm:$0xff]
        %v393 = vld [vmem:[%s1 + $0x30] sm:$0xff]
        %v394 = vld [vmem:[%s1 + $0x38] sm:$0xff]
        %v395 = vld [vmem:[%s2] sm:$0xff]
        %v396 = vld [vmem:[%s2 + $0x8] sm:$0xff]
        %v397 = vld [vmem:[%s2 + $0x10] sm:$0xff]
        %v398 = vld [vmem:[%s2 + $0x18] sm:$0xff]
        %v399 = vld [vmem:[%s2 + $0x20] sm:$0xff]
        %v400 = vld [vmem:[%s2 + $0x28] sm:$0xff]
        %v401 = vld [vmem:[%s2 + $0x30] sm:$0xff]
        %v402 = vld [vmem:[%s2 + $0x38] sm:$0xff]
        %v403 = vld [vmem:[%s3] sm:$0xff]
        %v404 = vld [vmem:[%s3 + $0x8] sm:$0xff]
        %v405 = vld [vmem:[%s3 + $0x10] sm:$0xff]
        %v406 = vld [vmem:[%s3 + $0x18] sm:$0xff]
        %v407 = vld [vmem:[%s3 + $0x20] sm:$0xff]
        %v408 = vld [vmem:[%s3 + $0x28] sm:$0xff]
        %v409 = vld [vmem:[%s3 + $0x30] sm:$0xff]
        %v410 = vld [vmem:[%s3 + $0x38] sm:$0xff]
        %vm411 = vcmask 64512
        %v413 = vsel %vm411, %v395, 0
        %v416 = vsel %vm411, %v396, 0
        %v419 = vsel %vm411, %v397, 0
        %v422 = vsel %vm411, %v398, 0
        %v425 = vsel %vm411, %v399, 0
        %v428 = vsel %vm411, %v400, 0
        %v431 = vsel %vm411, %v401, 0
        %v434 = vsel %vm411, %v402, 0
        %436 = vmatprep.subr.mxu0 %v386
        %437 = vmatpush1.msra.mxu0 %v385
        %438 = vmatprep.subr.mxu0 0.0
        %439 = vmatpush1.msra.mxu0 0.0
        %440 = vmatprep.subr.mxu0 0.0
        %441 = vmatpush1.msra.mxu0 0.0
        %442 = vmatprep.subr.mxu0 0.0
        %443 = vmatpush1.msra.mxu0 0.0
        %444 = vmatprep.subr.mxu0 0.0
        %445 = vmatpush1.msra.mxu0 0.0
        %446 = vmatprep.subr.mxu0 0.0
        %447 = vmatpush1.msra.mxu0 0.0
        %448 = vmatprep.subr.mxu0 0.0
        %449 = vmatpush1.msra.mxu0 0.0
        %450 = vmatprep.subr.mxu0 0.0
        %451 = vmatpush1.msra.mxu0 0.0
        %452 = vmatprep.subr.mxu0 0.0
        %453 = vmatpush1.msra.mxu0 0.0
        %454 = vmatprep.subr.mxu0 0.0
        %455 = vmatpush1.msra.mxu0 0.0
        %456 = vmatprep.subr.mxu0 0.0
        %457 = vmatpush1.msra.mxu0 0.0
        %458 = vmatprep.subr.mxu0 0.0
        %459 = vmatpush1.msra.mxu0 0.0
        %460 = vmatprep.subr.mxu0 0.0
        %461 = vmatpush1.msra.mxu0 0.0
        %462 = vmatprep.subr.mxu0 0.0
        %463 = vmatpush1.msra.mxu0 0.0
        %464 = vmatprep.subr.mxu0 0.0
        %465 = vmatpush1.msra.mxu0 0.0
        %466 = vmatprep.subr.mxu0 0.0
        %467 = vmatpush1.msra.mxu0 0.0
        %468 = vmatprep.subr.mxu0 0.0
        %469 = vmatpush1.msra.mxu0 0.0
        %470 = vmatprep.subr.mxu0 0.0
        %471 = vmatpush1.msra.mxu0 0.0
        %472 = vmatprep.subr.mxu0 0.0
        %473 = vmatpush1.msra.mxu0 0.0
        %474 = vmatprep.subr.mxu0 0.0
        %475 = vmatpush1.msra.mxu0 0.0
        %476 = vmatprep.subr.mxu0 0.0
        %477 = vmatpush1.msra.mxu0 0.0
        %478 = vmatprep.subr.mxu0 0.0
        %479 = vmatpush1.msra.mxu0 0.0
        %480 = vmatprep.subr.mxu0 0.0
        %481 = vmatpush1.msra.mxu0 0.0
        %482 = vmatprep.subr.mxu0 0.0
        %483 = vmatpush1.msra.mxu0 0.0
        %484 = vmatprep.subr.mxu0 0.0
        %485 = vmatpush1.msra.mxu0 0.0
        %486 = vmatprep.subr.mxu0 0.0
        %487 = vmatpush1.msra.mxu0 0.0
        %488 = vmatprep.subr.mxu0 0.0
        %489 = vmatpush1.msra.mxu0 0.0
        %490 = vmatprep.subr.mxu0 0.0
        %491 = vmatpush1.msra.mxu0 0.0
        %492 = vmatprep.subr.mxu0 0.0
        %493 = vmatpush1.msra.mxu0 0.0
        %494 = vmatprep.subr.mxu0 0.0
        %495 = vmatpush1.msra.mxu0 0.0
        %496 = vmatprep.subr.mxu0 0.0
        %497 = vmatpush1.msra.mxu0 0.0
        %498 = vmatprep.subr.mxu0 0.0
        %499 = vmatpush1.msra.mxu0 0.0
        %500 = vmatprep.mubr.f32.mxu0 0.0
        %501 = vmatmul.mubr.f32.gmra.mrb[0].mxu0 %v413
        %v502 = vpop.f32.mrb[0].mxu0
        %v503 = vadd.f32 0.0, %v502
        %v504 = vpop.f32.mrb[0].mxu0
        %v505 = vadd.f32 0.0, %v504
        %506 = vmatprep.mubr.f32.mxu0 0.0
        %507 = vmatmul.mubr.f32.gmra.mrb[0].mxu0 %v416
        %v508 = vpop.f32.mrb[0].mxu0
        %v509 = vadd.f32 0.0, %v508
        %v510 = vpop.f32.mrb[0].mxu0
        %v511 = vadd.f32 0.0, %v510
        %512 = vmatprep.mubr.f32.mxu0 0.0
        %513 = vmatmul.mubr.f32.gmra.mrb[0].mxu0 %v419
        %v514 = vpop.f32.mrb[0].mxu0
        %v515 = vadd.f32 0.0, %v514
        %v516 = vpop.f32.mrb[0].mxu0
        %v517 = vadd.f32 0.0, %v516
        %518 = vmatprep.mubr.f32.mxu0 0.0
        %519 = vmatmul.mubr.f32.gmra.mrb[0].mxu0 %v422
        %v520 = vpop.f32.mrb[0].mxu0
        %v521 = vadd.f32 0.0, %v520
        %v522 = vpop.f32.mrb[0].mxu0
        %v523 = vadd.f32 0.0, %v522
        %524 = vmatprep.mubr.f32.mxu0 0.0
        %525 = vmatmul.mubr.f32.gmra.mrb[0].mxu0 %v425
        %v526 = vpop.f32.mrb[0].mxu0
        %v527 = vadd.f32 0.0, %v526
        %v528 = vpop.f32.mrb[0].mxu0
        %v529 = vadd.f32 0.0, %v528
        %530 = vmatprep.mubr.f32.mxu0 0.0
        %531 = vmatmul.mubr.f32.gmra.mrb[0].mxu0 %v428
        %v532 = vpop.f32.mrb[0].mxu0
        %v533 = vadd.f32 0.0, %v532
        %v534 = vpop.f32.mrb[0].mxu0
        %v535 = vadd.f32 0.0, %v534
        %536 = vmatprep.mubr.f32.mxu0 0.0
        %537 = vmatmul.mubr.f32.gmra.mrb[0].mxu0 %v431
        %v538 = vpop.f32.mrb[0].mxu0
        %v539 = vadd.f32 0.0, %v538
        %v540 = vpop.f32.mrb[0].mxu0
        %v541 = vadd.f32 0.0, %v540
        %542 = vmatprep.mubr.f32.mxu0 0.0
        %543 = vmatmul.mubr.f32.gmra.mrb[0].mxu0 %v434
        %v544 = vpop.f32.mrb[0].mxu0
        %v545 = vadd.f32 0.0, %v544
        %v546 = vpop.f32.mrb[0].mxu0
        %v547 = vadd.f32 0.0, %v546
        %548 = vdwg.mxu0
        %550 = vset.pattern.permute.xlu0 0
        %551 = vperm.xlu0 %550, %v403
        %v552 = vpop.permute.xlu0 %551
        %555 = vset.pattern.permute.xlu0 0
        %556 = vperm.xlu0 %555, %v404
        %v557 = vpop.permute.xlu0 %556
        %560 = vset.pattern.permute.xlu0 0
        %561 = vperm.xlu0 %560, %v405
        %v562 = vpop.permute.xlu0 %561
        %565 = vset.pattern.permute.xlu0 0
        %566 = vperm.xlu0 %565, %v406
        %v567 = vpop.permute.xlu0 %566
        %570 = vset.pattern.permute.xlu0 0
        %571 = vperm.xlu0 %570, %v407
        %v572 = vpop.permute.xlu0 %571
        %575 = vset.pattern.permute.xlu0 0
        %576 = vperm.xlu0 %575, %v408
        %v577 = vpop.permute.xlu0 %576
        %580 = vset.pattern.permute.xlu0 0
        %581 = vperm.xlu0 %580, %v409
        %v582 = vpop.permute.xlu0 %581
        %585 = vset.pattern.permute.xlu0 0
        %586 = vperm.xlu0 %585, %v410
        %v587 = vpop.permute.xlu0 %586
        %v589 = vsub.f32 %v552, %v503
        %v590 = vsub.f32 %v552, %v505
        %v591 = vsub.f32 %v557, %v509
        %v592 = vsub.f32 %v557, %v511
        %v593 = vsub.f32 %v562, %v515
        %v594 = vsub.f32 %v562, %v517
        %v595 = vsub.f32 %v567, %v521
        %v596 = vsub.f32 %v567, %v523
        %v597 = vsub.f32 %v572, %v527
        %v598 = vsub.f32 %v572, %v529
        %v599 = vsub.f32 %v577, %v533
        %v600 = vsub.f32 %v577, %v535
        %v601 = vsub.f32 %v582, %v539
        %v602 = vsub.f32 %v582, %v541
        %v603 = vsub.f32 %v587, %v545
        %v604 = vsub.f32 %v587, %v547
        %v605 = vmin.f32 %v589, %v593
        %v606 = vmin.f32 %v591, %v595
        %v607 = vmin.f32 %v605, %v597
        %v608 = vmin.f32 %v606, %v599
        %v609 = vmin.f32 %v607, %v601
        %v610 = vmin.f32 %v608, %v603
        %v611 = vmin.f32 %v609, %v610
        %v612 = vrot.slane %v611, 4
        %v613 = vmin.f32 %v611, %v612
        %v614 = vrot.slane %v613, 2
        %v615 = vmin.f32 %v613, %v614
        %v616 = vrot.slane %v615, 1
        %v617 = vmin.f32 %v615, %v616
        %v618 = vmin.f32 %v590, %v594
        %v619 = vmin.f32 %v592, %v596
        %v620 = vmin.f32 %v618, %v598
        %v621 = vmin.f32 %v619, %v600
        %v622 = vmin.f32 %v620, %v602
        %v623 = vmin.f32 %v621, %v604
        %v624 = vmin.f32 %v622, %v623
        %v625 = vrot.slane %v624, 4
        %v626 = vmin.f32 %v624, %v625
        %v627 = vrot.slane %v626, 2
        %v628 = vmin.f32 %v626, %v627
        %v629 = vrot.slane %v628, 1
        %v630 = vmin.f32 %v628, %v629
        %v631 = vlaneseq
        %v632 = vshrl.u32 %v631, 7
        %v633 = vadd.s32 %v632, 8
        %v634 = vadd.s32 %v632, 16
        %v635 = vadd.s32 %v632, 24
        %v636 = vadd.s32 %v632, 32
        %v637 = vadd.s32 %v632, 40
        %v638 = vadd.s32 %v632, 48
        %v639 = vadd.s32 %v632, 56
        %vm640 = vcmp.eq.f32.partialorder %v589, %v617
        %vm641 = vcmp.eq.f32.partialorder %v590, %v630
        %vm642 = vcmp.eq.f32.partialorder %v591, %v617
        %vm643 = vcmp.eq.f32.partialorder %v592, %v630
        %vm644 = vcmp.eq.f32.partialorder %v593, %v617
        %vm645 = vcmp.eq.f32.partialorder %v594, %v630
        %vm646 = vcmp.eq.f32.partialorder %v595, %v617
        %vm647 = vcmp.eq.f32.partialorder %v596, %v630
        %vm648 = vcmp.eq.f32.partialorder %v597, %v617
        %vm649 = vcmp.eq.f32.partialorder %v598, %v630
        %vm650 = vcmp.eq.f32.partialorder %v599, %v617
        %vm651 = vcmp.eq.f32.partialorder %v600, %v630
        %vm652 = vcmp.eq.f32.partialorder %v601, %v617
        %vm653 = vcmp.eq.f32.partialorder %v602, %v630
        %vm654 = vcmp.eq.f32.partialorder %v603, %v617
        %vm655 = vcmp.eq.f32.partialorder %v604, %v630
        %v656 = vsel %vm640, %v632, 64
        %v657 = vsel %vm641, %v632, 64
        %v658 = vsel %vm642, %v633, 64
        %v659 = vsel %vm643, %v633, 64
        %v660 = vsel %vm644, %v634, 64
        %v661 = vsel %vm645, %v634, 64
        %v662 = vsel %vm646, %v635, 64
        %v663 = vsel %vm647, %v635, 64
        %v664 = vsel %vm648, %v636, 64
        %v665 = vsel %vm649, %v636, 64
        %v666 = vsel %vm650, %v637, 64
        %v667 = vsel %vm651, %v637, 64
        %v668 = vsel %vm652, %v638, 64
        %v669 = vsel %vm653, %v638, 64
        %v670 = vsel %vm654, %v639, 64
        %v671 = vsel %vm655, %v639, 64
        %vm672 = vcmp.lt.s32.totalorder %v656, %v660
        %v673 = vsel %vm672, %v656, %v660
        %vm674 = vcmp.lt.s32.totalorder %v658, %v662
        %v675 = vsel %vm674, %v658, %v662
        %vm676 = vcmp.lt.s32.totalorder %v673, %v664
        %v677 = vsel %vm676, %v673, %v664
        %vm678 = vcmp.lt.s32.totalorder %v675, %v666
        %v679 = vsel %vm678, %v675, %v666
        %vm680 = vcmp.lt.s32.totalorder %v677, %v668
        %v681 = vsel %vm680, %v677, %v668
        %vm682 = vcmp.lt.s32.totalorder %v679, %v670
        %v683 = vsel %vm682, %v679, %v670
        %vm684 = vcmp.lt.s32.totalorder %v681, %v683
        %v685 = vsel %vm684, %v681, %v683
        %v686 = vrot.slane %v685, 4
        %vm687 = vcmp.lt.s32.totalorder %v685, %v686
        %v688 = vsel %vm687, %v685, %v686
        %v689 = vrot.slane %v688, 2
        %vm690 = vcmp.lt.s32.totalorder %v688, %v689
        %v691 = vsel %vm690, %v688, %v689
        %v692 = vrot.slane %v691, 1
        %vm693 = vcmp.lt.s32.totalorder %v691, %v692
        %v694 = vsel %vm693, %v691, %v692
        %vm695 = vcmp.lt.s32.totalorder %v657, %v661
        %v696 = vsel %vm695, %v657, %v661
        %vm697 = vcmp.lt.s32.totalorder %v659, %v663
        %v698 = vsel %vm697, %v659, %v663
        %vm699 = vcmp.lt.s32.totalorder %v696, %v665
        %v700 = vsel %vm699, %v696, %v665
        %vm701 = vcmp.lt.s32.totalorder %v698, %v667
        %v702 = vsel %vm701, %v698, %v667
        %vm703 = vcmp.lt.s32.totalorder %v700, %v669
        %v704 = vsel %vm703, %v700, %v669
        %vm705 = vcmp.lt.s32.totalorder %v702, %v671
        %v706 = vsel %vm705, %v702, %v671
        %vm707 = vcmp.lt.s32.totalorder %v704, %v706
        %v708 = vsel %vm707, %v704, %v706
        %v709 = vrot.slane %v708, 4
        %vm710 = vcmp.lt.s32.totalorder %v708, %v709
        %v711 = vsel %vm710, %v708, %v709
        %v712 = vrot.slane %v711, 2
        %vm713 = vcmp.lt.s32.totalorder %v711, %v712
        %v714 = vsel %vm713, %v711, %v712
        %v715 = vrot.slane %v714, 1
        %vm716 = vcmp.lt.s32.totalorder %v714, %v715
        %v717 = vsel %vm716, %v714, %v715
        %vm718 = vcmp.eq.s32.totalorder %v632, %v694
        %vm719 = vcmp.eq.s32.totalorder %v632, %v717
        %vm720 = vcmp.eq.s32.totalorder %v633, %v694
        %vm721 = vcmp.eq.s32.totalorder %v633, %v717
        %vm722 = vcmp.eq.s32.totalorder %v634, %v694
        %vm723 = vcmp.eq.s32.totalorder %v634, %v717
        %vm724 = vcmp.eq.s32.totalorder %v635, %v694
        %vm725 = vcmp.eq.s32.totalorder %v635, %v717
        %vm726 = vcmp.eq.s32.totalorder %v636, %v694
        %vm727 = vcmp.eq.s32.totalorder %v636, %v717
        %vm728 = vcmp.eq.s32.totalorder %v637, %v694
        %vm729 = vcmp.eq.s32.totalorder %v637, %v717
        %vm730 = vcmp.eq.s32.totalorder %v638, %v694
        %vm731 = vcmp.eq.s32.totalorder %v638, %v717
        %vm732 = vcmp.eq.s32.totalorder %v639, %v694
        %vm733 = vcmp.eq.s32.totalorder %v639, %v717
        %v734 = vsel %vm718, 1, 0
        %v735 = vsel %vm719, 1, 0
        %v736 = vsel %vm720, 1, 0
        %v737 = vsel %vm721, 1, 0
        %v738 = vsel %vm722, 1, 0
        %v739 = vsel %vm723, 1, 0
        %v740 = vsel %vm724, 1, 0
        %v741 = vsel %vm725, 1, 0
        %v742 = vsel %vm726, 1, 0
        %v743 = vsel %vm727, 1, 0
        %v744 = vsel %vm728, 1, 0
        %v745 = vsel %vm729, 1, 0
        %v746 = vsel %vm730, 1, 0
        %v747 = vsel %vm731, 1, 0
        %v748 = vsel %vm732, 1, 0
        %v749 = vsel %vm733, 1, 0
        %v750 = vcvt.s32.f32 %v734
        %v751 = vcvt.s32.f32 %v735
        %v752 = vcvt.s32.f32 %v736
        %v753 = vcvt.s32.f32 %v737
        %v754 = vcvt.s32.f32 %v738
        %v755 = vcvt.s32.f32 %v739
        %v756 = vcvt.s32.f32 %v740
        %v757 = vcvt.s32.f32 %v741
        %v758 = vcvt.s32.f32 %v742
        %v759 = vcvt.s32.f32 %v743
        %v760 = vcvt.s32.f32 %v744
        %v761 = vcvt.s32.f32 %v745
        %v762 = vcvt.s32.f32 %v746
        %v763 = vcvt.s32.f32 %v747
        %v764 = vcvt.s32.f32 %v748
        %v765 = vcvt.s32.f32 %v749
        %766 = vxpose.xlu0.b32.start [1/16] %v387, 128
        %767 = vxpose.xlu0.b32.cont [2/16] %v388, 128
        %768 = vxpose.xlu0.b32.cont [3/16] %v389, 128
        %769 = vxpose.xlu0.b32.cont [4/16] %v390, 128
        %770 = vxpose.xlu0.b32.cont [5/16] %v391, 128
        %771 = vxpose.xlu0.b32.cont [6/16] %v392, 128
        %772 = vxpose.xlu0.b32.cont [7/16] %v393, 128
        %773 = vxpose.xlu0.b32.cont [8/16] %v394, 128
        %774 = vxpose.xlu0.b32.cont [9/16] 0.0, 128
        %775 = vxpose.xlu0.b32.cont [10/16] 0.0, 128
        %776 = vxpose.xlu0.b32.cont [11/16] 0.0, 128
        %777 = vxpose.xlu0.b32.cont [12/16] 0.0, 128
        %778 = vxpose.xlu0.b32.cont [13/16] 0.0, 128
        %779 = vxpose.xlu0.b32.cont [14/16] 0.0, 128
        %780 = vxpose.xlu0.b32.cont [15/16] 0.0, 128
        %781 = vxpose.xlu0.b32.end [16/16] 0.0, 128
        %v782 = vpop.trf.xlu0
        %v783 = vpop.trf.xlu0
        %v784 = vpop.trf.xlu0
        %v785 = vpop.trf.xlu0
        %v786 = vpop.trf.xlu0
        %v787 = vpop.trf.xlu0
        %v788 = vpop.trf.xlu0
        %v789 = vpop.trf.xlu0
        %v790 = vpop.trf.xlu0
        %v791 = vpop.trf.xlu0
        %v792 = vpop.trf.xlu0
        %v793 = vpop.trf.xlu0
        %v794 = vpop.trf.xlu0
        %v795 = vpop.trf.xlu0
        %v796 = vpop.trf.xlu0
        %v797 = vpop.trf.xlu0
        %vm798 = vcmask 523264
        %v800 = vsel %vm798, %v782, 0
        %802 = vmatprep.subr.mxu0 %v751
        %803 = vmatpush1.msra.mxu0 %v750
        %804 = vmatprep.subr.mxu0 %v753
        %805 = vmatpush1.msra.mxu0 %v752
        %806 = vmatprep.subr.mxu0 %v755
        %807 = vmatpush1.msra.mxu0 %v754
        %808 = vmatprep.subr.mxu0 %v757
        %809 = vmatpush1.msra.mxu0 %v756
        %810 = vmatprep.subr.mxu0 %v759
        %811 = vmatpush1.msra.mxu0 %v758
        %812 = vmatprep.subr.mxu0 %v761
        %813 = vmatpush1.msra.mxu0 %v760
        %814 = vmatprep.subr.mxu0 %v763
        %815 = vmatpush1.msra.mxu0 %v762
        %816 = vmatprep.subr.mxu0 %v765
        %817 = vmatpush1.msra.mxu0 %v764
        %818 = vmatprep.subr.mxu0 0.0
        %819 = vmatpush1.msra.mxu0 0.0
        %820 = vmatprep.subr.mxu0 0.0
        %821 = vmatpush1.msra.mxu0 0.0
        %822 = vmatprep.subr.mxu0 0.0
        %823 = vmatpush1.msra.mxu0 0.0
        %824 = vmatprep.subr.mxu0 0.0
        %825 = vmatpush1.msra.mxu0 0.0
        %826 = vmatprep.subr.mxu0 0.0
        %827 = vmatpush1.msra.mxu0 0.0
        %828 = vmatprep.subr.mxu0 0.0
        %829 = vmatpush1.msra.mxu0 0.0
        %830 = vmatprep.subr.mxu0 0.0
        %831 = vmatpush1.msra.mxu0 0.0
        %832 = vmatprep.subr.mxu0 0.0
        %833 = vmatpush1.msra.mxu0 0.0
        %834 = vmatprep.subr.mxu0 0.0
        %835 = vmatpush1.msra.mxu0 0.0
        %836 = vmatprep.subr.mxu0 0.0
        %837 = vmatpush1.msra.mxu0 0.0
        %838 = vmatprep.subr.mxu0 0.0
        %839 = vmatpush1.msra.mxu0 0.0
        %840 = vmatprep.subr.mxu0 0.0
        %841 = vmatpush1.msra.mxu0 0.0
        %842 = vmatprep.subr.mxu0 0.0
        %843 = vmatpush1.msra.mxu0 0.0
        %844 = vmatprep.subr.mxu0 0.0
        %845 = vmatpush1.msra.mxu0 0.0
        %846 = vmatprep.subr.mxu0 0.0
        %847 = vmatpush1.msra.mxu0 0.0
        %848 = vmatprep.subr.mxu0 0.0
        %849 = vmatpush1.msra.mxu0 0.0
        %850 = vmatprep.subr.mxu0 0.0
        %851 = vmatpush1.msra.mxu0 0.0
        %852 = vmatprep.subr.mxu0 0.0
        %853 = vmatpush1.msra.mxu0 0.0
        %854 = vmatprep.subr.mxu0 0.0
        %855 = vmatpush1.msra.mxu0 0.0
        %856 = vmatprep.subr.mxu0 0.0
        %857 = vmatpush1.msra.mxu0 0.0
        %858 = vmatprep.subr.mxu0 0.0
        %859 = vmatpush1.msra.mxu0 0.0
        %860 = vmatprep.subr.mxu0 0.0
        %861 = vmatpush1.msra.mxu0 0.0
        %862 = vmatprep.subr.mxu0 0.0
        %863 = vmatpush1.msra.mxu0 0.0
        %864 = vmatprep.subr.mxu0 0.0
        %865 = vmatpush1.msra.mxu0 0.0
        %866 = vmatprep.mubr.f32.mxu0 0.0
        %867 = vmatmul.mubr.f32.gmra.mrb[0].mxu0 %v800
        %v868 = vpop.f32.mrb[0].mxu0
        %v869 = vadd.f32 0.0, %v868
        %v870 = vpop.f32.mrb[0].mxu0
        %v871 = vadd.f32 0.0, %v870
        %872 = vdwg.mxu0
        %873 = vst [vmem:[%s332] sm:$0xff] %v869
        %874 = vst [vmem:[%s332 + $0x8] sm:$0xff] %v871
        %v875 = vcombine.low %v694, %v717
        %v877 = vunpack.c.l.s4 1966171168
        %v878 = vunpack.c.0.s8 %v877
        %v879 = vlaneseq
        %v880 = vshrl.u32 %v879, 7
        %v881 = vsub.s32 %v878, %v880
        %v882 = vrot.slane %v875, %v881
        %v884 = vunpack.c.l.s4 1966171168
        %v885 = vunpack.c.0.s8 %v884
        %v886 = vlaneseq
        %v887 = vshrl.u32 %v886, 7
        %v888 = vsub.s32 %v885, %v887
        %v889 = vrot.slane %v882, %v888
        %v890 = vlaneseq
        %vm891 = vcmp.ge.s32.totalorder %v890, 0
        %vm892 = vcmp.lt.s32.totalorder %v890, 256
        %vm893 = vmand %vm891, %vm892
        %894 = vst.msk [vmem:[%s339] sm:$0x3] %vm893, %v889
        %v895 = vsub.f32 %v385, %v869
        %v896 = vsub.f32 %v386, %v871
        %v897 = vmul.f32 %v895, %v895
        %v898 = vmul.f32 %v896, %v896
        %v899 = vrot.slane %v897, 4
        %v900 = vadd.f32 %v897, %v899
        %v901 = vrot.slane %v900, 2
        %v902 = vadd.f32 %v900, %v901
        %v903 = vrot.slane %v902, 1
        %v904 = vadd.f32 %v902, %v903
        %v905 = vrot.slane %v898, 4
        %v906 = vadd.f32 %v898, %v905
        %v907 = vrot.slane %v906, 2
        %v908 = vadd.f32 %v906, %v907
        %v909 = vrot.slane %v908, 1
        %v910 = vadd.f32 %v908, %v909
        %v911 = vld [vmem:[%s346] sm:$0x3]
        %v914 = vcombine.low %v904, %v910
        %v916 = vunpack.c.l.s4 1966171168
        %v917 = vunpack.c.0.s8 %v916
        %v918 = vlaneseq
        %v919 = vshrl.u32 %v918, 7
        %v920 = vsub.s32 %v917, %v919
        %v921 = vrot.slane %v914, %v920
        %v923 = vunpack.c.l.s4 1966171168
        %v924 = vunpack.c.0.s8 %v923
        %v925 = vlaneseq
        %v926 = vshrl.u32 %v925, 7
        %v927 = vsub.s32 %v924, %v926
        %v928 = vrot.slane %v921, %v927
        %v930 = vadd.f32 %v911, %v928
        %931 = vst.msk [vmem:[%s346] sm:$0x3] %vm893, %v930
        %v932 = vld [vmem:[%s353] sm:$0xff]
        %933 = vmatprep.subr.mxu0 %v751
        %934 = vmatpush1.xpose.msra.mxu0 %v750
        %935 = vmatprep.subr.mxu0 %v753
        %936 = vmatpush1.xpose.msra.mxu0 %v752
        %937 = vmatprep.subr.mxu0 %v755
        %938 = vmatpush1.xpose.msra.mxu0 %v754
        %939 = vmatprep.subr.mxu0 %v757
        %940 = vmatpush1.xpose.msra.mxu0 %v756
        %941 = vmatprep.subr.mxu0 %v759
        %942 = vmatpush1.xpose.msra.mxu0 %v758
        %943 = vmatprep.subr.mxu0 %v761
        %944 = vmatpush1.xpose.msra.mxu0 %v760
        %945 = vmatprep.subr.mxu0 %v763
        %946 = vmatpush1.xpose.msra.mxu0 %v762
        %947 = vmatprep.subr.mxu0 %v765
        %948 = vmatpush1.xpose.msra.mxu0 %v764
        %949 = vmatprep.subr.mxu0 0.0
        %950 = vmatpush1.xpose.msra.mxu0 0.0
        %951 = vmatprep.subr.mxu0 0.0
        %952 = vmatpush1.xpose.msra.mxu0 0.0
        %953 = vmatprep.subr.mxu0 0.0
        %954 = vmatpush1.xpose.msra.mxu0 0.0
        %955 = vmatprep.subr.mxu0 0.0
        %956 = vmatpush1.xpose.msra.mxu0 0.0
        %957 = vmatprep.subr.mxu0 0.0
        %958 = vmatpush1.xpose.msra.mxu0 0.0
        %959 = vmatprep.subr.mxu0 0.0
        %960 = vmatpush1.xpose.msra.mxu0 0.0
        %961 = vmatprep.subr.mxu0 0.0
        %962 = vmatpush1.xpose.msra.mxu0 0.0
        %963 = vmatprep.subr.mxu0 0.0
        %964 = vmatpush1.xpose.msra.mxu0 0.0
        %965 = vmatprep.subr.mxu0 0.0
        %966 = vmatpush1.xpose.msra.mxu0 0.0
        %967 = vmatprep.subr.mxu0 0.0
        %968 = vmatpush1.xpose.msra.mxu0 0.0
        %969 = vmatprep.subr.mxu0 0.0
        %970 = vmatpush1.xpose.msra.mxu0 0.0
        %971 = vmatprep.subr.mxu0 0.0
        %972 = vmatpush1.xpose.msra.mxu0 0.0
        %973 = vmatprep.subr.mxu0 0.0
        %974 = vmatpush1.xpose.msra.mxu0 0.0
        %975 = vmatprep.subr.mxu0 0.0
        %976 = vmatpush1.xpose.msra.mxu0 0.0
        %977 = vmatprep.subr.mxu0 0.0
        %978 = vmatpush1.xpose.msra.mxu0 0.0
        %979 = vmatprep.subr.mxu0 0.0
        %980 = vmatpush1.xpose.msra.mxu0 0.0
        %981 = vmatprep.subr.mxu0 0.0
        %982 = vmatpush1.xpose.msra.mxu0 0.0
        %983 = vmatprep.subr.mxu0 0.0
        %984 = vmatpush1.xpose.msra.mxu0 0.0
        %985 = vmatprep.subr.mxu0 0.0
        %986 = vmatpush1.xpose.msra.mxu0 0.0
        %987 = vmatprep.subr.mxu0 0.0
        %988 = vmatpush1.xpose.msra.mxu0 0.0
        %989 = vmatprep.subr.mxu0 0.0
        %990 = vmatpush1.xpose.msra.mxu0 0.0
        %991 = vmatprep.subr.mxu0 0.0
        %992 = vmatpush1.xpose.msra.mxu0 0.0
        %993 = vmatprep.subr.mxu0 0.0
        %994 = vmatpush1.xpose.msra.mxu0 0.0
        %995 = vmatprep.subr.mxu0 0.0
        %996 = vmatpush1.xpose.msra.mxu0 0.0
        %997 = vmatprep.mubr.f32.mxu0 %v386
        %998 = vmatmul.mubr.f32.gmra.mrb[0].mxu0 %v385
        %v999 = vpop.f32.mrb[0].mxu0
        %v1000 = vadd.f32 0.0, %v999
        %v1001 = vpop.f32.mrb[0].mxu0
        %1002 = vdwg.mxu0
        %v1003 = vadd.f32 %v932, %v1000
        %1004 = vst.msk [vmem:[%s353] sm:$0xff] %vm798, %v1003
        %v1005 = vld [vmem:[%s360] sm:$0xff]
        %1006 = vmatprep.subr.mxu0 %v751
        %1007 = vmatpush1.xpose.msra.mxu0 %v750
        %1008 = vmatprep.subr.mxu0 %v753
        %1009 = vmatpush1.xpose.msra.mxu0 %v752
        %1010 = vmatprep.subr.mxu0 %v755
        %1011 = vmatpush1.xpose.msra.mxu0 %v754
        %1012 = vmatprep.subr.mxu0 %v757
        %1013 = vmatpush1.xpose.msra.mxu0 %v756
        %1014 = vmatprep.subr.mxu0 %v759
        %1015 = vmatpush1.xpose.msra.mxu0 %v758
        %1016 = vmatprep.subr.mxu0 %v761
        %1017 = vmatpush1.xpose.msra.mxu0 %v760
        %1018 = vmatprep.subr.mxu0 %v763
        %1019 = vmatpush1.xpose.msra.mxu0 %v762
        %1020 = vmatprep.subr.mxu0 %v765
        %1021 = vmatpush1.xpose.msra.mxu0 %v764
        %1022 = vmatprep.subr.mxu0 0.0
        %1023 = vmatpush1.xpose.msra.mxu0 0.0
        %1024 = vmatprep.subr.mxu0 0.0
        %1025 = vmatpush1.xpose.msra.mxu0 0.0
        %1026 = vmatprep.subr.mxu0 0.0
        %1027 = vmatpush1.xpose.msra.mxu0 0.0
        %1028 = vmatprep.subr.mxu0 0.0
        %1029 = vmatpush1.xpose.msra.mxu0 0.0
        %1030 = vmatprep.subr.mxu0 0.0
        %1031 = vmatpush1.xpose.msra.mxu0 0.0
        %1032 = vmatprep.subr.mxu0 0.0
        %1033 = vmatpush1.xpose.msra.mxu0 0.0
        %1034 = vmatprep.subr.mxu0 0.0
        %1035 = vmatpush1.xpose.msra.mxu0 0.0
        %1036 = vmatprep.subr.mxu0 0.0
        %1037 = vmatpush1.xpose.msra.mxu0 0.0
        %1038 = vmatprep.subr.mxu0 0.0
        %1039 = vmatpush1.xpose.msra.mxu0 0.0
        %1040 = vmatprep.subr.mxu0 0.0
        %1041 = vmatpush1.xpose.msra.mxu0 0.0
        %1042 = vmatprep.subr.mxu0 0.0
        %1043 = vmatpush1.xpose.msra.mxu0 0.0
        %1044 = vmatprep.subr.mxu0 0.0
        %1045 = vmatpush1.xpose.msra.mxu0 0.0
        %1046 = vmatprep.subr.mxu0 0.0
        %1047 = vmatpush1.xpose.msra.mxu0 0.0
        %1048 = vmatprep.subr.mxu0 0.0
        %1049 = vmatpush1.xpose.msra.mxu0 0.0
        %1050 = vmatprep.subr.mxu0 0.0
        %1051 = vmatpush1.xpose.msra.mxu0 0.0
        %1052 = vmatprep.subr.mxu0 0.0
        %1053 = vmatpush1.xpose.msra.mxu0 0.0
        %1054 = vmatprep.subr.mxu0 0.0
        %1055 = vmatpush1.xpose.msra.mxu0 0.0
        %1056 = vmatprep.subr.mxu0 0.0
        %1057 = vmatpush1.xpose.msra.mxu0 0.0
        %1058 = vmatprep.subr.mxu0 0.0
        %1059 = vmatpush1.xpose.msra.mxu0 0.0
        %1060 = vmatprep.subr.mxu0 0.0
        %1061 = vmatpush1.xpose.msra.mxu0 0.0
        %1062 = vmatprep.subr.mxu0 0.0
        %1063 = vmatpush1.xpose.msra.mxu0 0.0
        %1064 = vmatprep.subr.mxu0 0.0
        %1065 = vmatpush1.xpose.msra.mxu0 0.0
        %1066 = vmatprep.subr.mxu0 0.0
        %1067 = vmatpush1.xpose.msra.mxu0 0.0
        %1068 = vmatprep.subr.mxu0 0.0
        %1069 = vmatpush1.xpose.msra.mxu0 0.0
        %1070 = vmatprep.mubr.f32.mxu0 1.0
        %1071 = vmatmul.mubr.f32.gmra.mrb[0].mxu0 1.0
        %v1072 = vpop.f32.mrb[0].mxu0
        %v1073 = vadd.f32 0.0, %v1072
        %v1074 = vpop.f32.mrb[0].mxu0
        %1075 = vdwg.mxu0
        %v1076 = vadd.f32 %v1005, %v1073
        %1077 = vst.msk [vmem:[%s360] sm:$0xff] %vm798, %v1076
        %s1078 = sand.u32 %s142, 1
        %s1079 = scalar_lea.sflag [#allocation3], %s1078
        %s1080 = sand.u32 %s142, 1
        %s1081 = smul.addr %s1080, 16
        %s1082 = scalar_lea.vmem [#allocation2], %s1081
        %s1083 = sand.u32 %s29, 1
        %s1084 = scalar_lea.sflag [#allocation5], %s1083
        %s1085 = sand.u32 %s170, 1
        %s1086 = smul.addr %s1085, 2
        %s1087 = scalar_lea.vmem [#allocation4], %s1086
        %s1088 = sand.u32 %s29, 1
        %s1089 = scalar_lea.sflag [#allocation5], %s1088
        %s1090 = sand.u32 %s196, 1
        %s1091 = smul.addr %s1090, 2
        %s1092 = scalar_lea.vmem [#allocation6], %s1091
        %s1093 = sand.u32 %s29, 1
        %s1094 = scalar_lea.sflag [#allocation8], %s1093
        %s1095 = sand.u32 %s222, 1
        %s1096 = smul.addr %s1095, 8
        %s1097 = scalar_lea.vmem [#allocation7], %s1096
        %s1098 = sand.u32 %s29, 1
        %s1099 = scalar_lea.sflag [#allocation8], %s1098
        %s1100 = sand.u32 %s248, 1
        %s1101 = smul.addr %s1100, 8
        %s1102 = scalar_lea.vmem [#allocation9], %s1101
        // Predicated region
        $region41: #{tpu_custom_call.1} parent=35 // pred_check
          %p1103 = pneg %p152
        $region42: #{tpu_custom_call.1} parent=35 // pred_check_branch
          %1105 = sbr.rel (%p1103) target = $region44
        $region43: #{tpu_custom_call.1} parent=35 // pred_region
          %s1106 = smul.u32 2, %s34
          %s1108 = ssub.s32 256, 256
          %1109 = vsyncadd %s1079, %s1108
          %s1110 = smul.addr %s33, 2
          %s1111 = sadd.s32 %s1106, %s1110
          %s1112 = smul.addr %s1111, 128
          %s1113 = scalar_lea.hbm %s4, %s1112
          %s1115 = sshll.u32 %s1082, 4
          %s1116 = int_to_ptr.vmem [resolvable:$true] %s1115
          %1118 = dma.vmem_to_hbm [thread:$0]  %s1116, 256, %s1113, %s1079
        $region44: #{tpu_custom_call.1} parent=35 // pred_fallthru
          _
        // Predicated region
        $region45: #{tpu_custom_call.1} parent=35 // pred_check
          %p1119 = pneg %p180
        $region46: #{tpu_custom_call.1} parent=35 // pred_check_branch
          %1121 = sbr.rel (%p1119) target = $region48
        $region47: #{tpu_custom_call.1} parent=35 // pred_region
          %s1122 = smul.u32 2, %s34
          %s1124 = ssub.s32 32, 32
          %1125 = vsyncadd %s1084, %s1124
          %s1126 = smul.addr %s33, 2
          %s1127 = sadd.s32 %s1122, %s1126
          %s1128 = smul.addr %s1127, 16
          %s1129 = scalar_lea.hbm %s5, %s1128
          %s1131 = sshll.u32 %s1087, 4
          %s1132 = int_to_ptr.vmem [resolvable:$true] %s1131
          %1134 = dma.vmem_to_hbm [thread:$0]  %s1132, 32, %s1129, %s1084
        $region48: #{tpu_custom_call.1} parent=35 // pred_fallthru
          _
        // Predicated region
        $region49: #{tpu_custom_call.1} parent=35 // pred_check
          %p1135 = pneg %p206
        $region50: #{tpu_custom_call.1} parent=35 // pred_check_branch
          %1137 = sbr.rel (%p1135) target = $region52
        $region51: #{tpu_custom_call.1} parent=35 // pred_region
          %s1139 = ssub.s32 32, 32
          %1140 = vsyncadd %s1089, %s1139
          %s1141 = smul.addr %s33, 2
          %s1142 = smul.addr %s1141, 16
          %s1143 = scalar_lea.hbm %s6, %s1142
          %s1145 = sshll.u32 %s1092, 4
          %s1146 = int_to_ptr.vmem [resolvable:$true] %s1145
          %1148 = dma.vmem_to_hbm [thread:$0]  %s1146, 32, %s1143, %s1089
        $region52: #{tpu_custom_call.1} parent=35 // pred_fallthru
          _
        // Predicated region
        $region53: #{tpu_custom_call.1} parent=35 // pred_check
          %p1149 = pneg %p232
        $region54: #{tpu_custom_call.1} parent=35 // pred_check_branch
          %1151 = sbr.rel (%p1149) target = $region56
        $region55: #{tpu_custom_call.1} parent=35 // pred_region
          %s1153 = ssub.s32 128, 128
          %1154 = vsyncadd %s1094, %s1153
          %s1155 = smul.addr %s33, 128
          %s1156 = scalar_lea.hbm %s7, %s1155
          %s1158 = sshll.u32 %s1097, 4
          %s1159 = int_to_ptr.vmem [resolvable:$true] %s1158
          %1161 = dma.vmem_to_hbm [thread:$0]  %s1159, 128, %s1156, %s1094
        $region56: #{tpu_custom_call.1} parent=35 // pred_fallthru
          _
        // Predicated region
        $region57: #{tpu_custom_call.1} parent=35 // pred_check
          %p1162 = pneg %p258
        $region58: #{tpu_custom_call.1} parent=35 // pred_check_branch
          %1164 = sbr.rel (%p1162) target = $region60
        $region59: #{tpu_custom_call.1} parent=35 // pred_region
          %s1166 = ssub.s32 128, 128
          %1167 = vsyncadd %s1099, %s1166
          %s1168 = smul.addr %s33, 128
          %s1169 = scalar_lea.hbm %s8, %s1168
          %s1171 = sshll.u32 %s1102, 4
          %s1172 = int_to_ptr.vmem [resolvable:$true] %s1171
          %1174 = dma.vmem_to_hbm [thread:$0]  %s1172, 128, %s1169, %s1099
        $region60: #{tpu_custom_call.1} parent=35 // pred_fallthru
          _
      $region36: #{tpu_custom_call.1} parent=5 // pred_fallthru
        _
      %p1175 = scmp.le.s32.totalorder 2, %s24
      // Predicated region
      $region61: #{tpu_custom_call.1} parent=5 // pred_check
        %p1176 = pneg %p1175
      $region62: #{tpu_custom_call.1} parent=5 // pred_check_branch
        %1178 = sbr.rel (%p1176) target = $region64
      $region63: #{tpu_custom_call.1} parent=5 // pred_region
        %s1179 = ssub.s32 %s24, 2
        // Predicated region
        $region65: #{tpu_custom_call.1} parent=63 // pred_check
          %p1180 = pneg %p158
        $region66: #{tpu_custom_call.1} parent=63 // pred_check_branch
          %1182 = sbr.rel (%p1180) target = $region68
        $region67: #{tpu_custom_call.1} parent=63 // pred_region
          %s1183 = sand.u32 %s143, 1
          %s1184 = scalar_lea.sflag [#allocation3], %s1183
          %s1185 = sand.u32 %s143, 1
          %s1186 = smul.addr %s1185, 16
          %s1187 = scalar_lea.vmem [#allocation2], %s1186
          %1188 = dma.done %s1184, 256
        $region68: #{tpu_custom_call.1} parent=63 // pred_fallthru
          _
        // Predicated region
        $region69: #{tpu_custom_call.1} parent=63 // pred_check
          %p1189 = pneg %p186
        $region70: #{tpu_custom_call.1} parent=63 // pred_check_branch
          %1191 = sbr.rel (%p1189) target = $region72
        $region71: #{tpu_custom_call.1} parent=63 // pred_region
          %s1192 = sand.u32 %s30, 1
          %s1193 = scalar_lea.sflag [#allocation5], %s1192
          %s1194 = sand.u32 %s171, 1
          %s1195 = smul.addr %s1194, 2
          %s1196 = scalar_lea.vmem [#allocation4], %s1195
          %1197 = dma.done %s1193, 32
        $region72: #{tpu_custom_call.1} parent=63 // pred_fallthru
          _
        // Predicated region
        $region73: #{tpu_custom_call.1} parent=63 // pred_check
          %p1198 = pneg %p212
        $region74: #{tpu_custom_call.1} parent=63 // pred_check_branch
          %1200 = sbr.rel (%p1198) target = $region76
        $region75: #{tpu_custom_call.1} parent=63 // pred_region
          %s1201 = sand.u32 %s30, 1
          %s1202 = scalar_lea.sflag [#allocation5], %s1201
          %s1203 = sand.u32 %s197, 1
          %s1204 = smul.addr %s1203, 2
          %s1205 = scalar_lea.vmem [#allocation6], %s1204
          %1206 = dma.done %s1202, 32
        $region76: #{tpu_custom_call.1} parent=63 // pred_fallthru
          _
        // Predicated region
        $region77: #{tpu_custom_call.1} parent=63 // pred_check
          %p1207 = pneg %p238
        $region78: #{tpu_custom_call.1} parent=63 // pred_check_branch
          %1209 = sbr.rel (%p1207) target = $region80
        $region79: #{tpu_custom_call.1} parent=63 // pred_region
          %s1210 = sand.u32 %s30, 1
          %s1211 = scalar_lea.sflag [#allocation8], %s1210
          %s1212 = sand.u32 %s223, 1
          %s1213 = smul.addr %s1212, 8
          %s1214 = scalar_lea.vmem [#allocation7], %s1213
          %1215 = dma.done %s1211, 128
        $region80: #{tpu_custom_call.1} parent=63 // pred_fallthru
          _
        // Predicated region
        $region81: #{tpu_custom_call.1} parent=63 // pred_check
          %p1216 = pneg %p264
        $region82: #{tpu_custom_call.1} parent=63 // pred_check_branch
          %1218 = sbr.rel (%p1216) target = $region84
        $region83: #{tpu_custom_call.1} parent=63 // pred_region
          %s1219 = sand.u32 %s30, 1
          %s1220 = scalar_lea.sflag [#allocation8], %s1219
          %s1221 = sand.u32 %s249, 1
          %s1222 = smul.addr %s1221, 8
          %s1223 = scalar_lea.vmem [#allocation9], %s1222
          %1224 = dma.done %s1220, 128
        $region84: #{tpu_custom_call.1} parent=63 // pred_fallthru
          _
      $region64: #{tpu_custom_call.1} parent=5 // pred_fallthru
        _
    $region6: #{tpu_custom_call.1} parent=1 // loop_footer
      %s28 = sadd.s32 1, %s24
    $region7: #{tpu_custom_call.1} parent=1 // loop_footer_branch
      %23 = sbr.rel target = $region3
    $region8: #{tpu_custom_call.1} parent=1 // loop_exit
      _
    %1225 = vsyncpa [#allocation3], 1
    %s1226 = scalar_lea.sflag [#allocation3], 1
    %1227 = vsyncpa %s1226, 1
    %1228 = vsyncpa [#allocation5], 1
    %s1229 = scalar_lea.sflag [#allocation5], 1
    %1230 = vsyncpa %s1229, 1
    %1231 = vsyncpa [#allocation8], 1
    %s1232 = scalar_lea.sflag [#allocation8], 1
    %1233 = vsyncpa %s1232, 1

</llo_original>
